<compile_context>
chip_gen: v7x
topology: tpu7x:2x2x1
jax: 0.10.0
libtpu: 0.0.40
codegen_flags: <defaults>
</compile_context>

<pallas_src>
import functools

import jax
import jax.numpy as jnp
from jax.experimental import pallas as pl
from jax.experimental.pallas import tpu as pltpu

LANE = 128
SUBLANE = 8


def _round_up(x, m):
    return ((x + m - 1) // m) * m


def _pad_to(x, target_shape):
    pads = [(0, t - s) for s, t in zip(x.shape, target_shape)]
    if all(p == (0, 0) for p in pads):
        return x
    return jnp.pad(x, pads)


def _bilinear_attn_kernel(q_ref, k_ref, val_ref,
                          wq_t_ref, bq_ref, wk_t_ref, v_ref,
                          out_ref, attn_ref,
                          uh_ref,
                          *, lk_actual, compute_dtype):
    qi = pl.program_id(1)

    # Key projection is shared across all query tiles of one batch element:
    # compute it once (first q-tile) and keep it resident in VMEM scratch.
    @pl.when(qi == 0)
    def _():
        uh = jnp.dot(k_ref[0], wk_t_ref[...],
                     preferred_element_type=jnp.float32)          # (Lk_p, H_p) f32
        uh_ref[...] = uh.astype(compute_dtype)

    # Query projection for this tile (bf16 MXU operands, f32 accumulation).
    wq = jnp.dot(q_ref[0], wq_t_ref[...],
                 preferred_element_type=jnp.float32) + bq_ref[...]  # (TQ, H_p) f32
    wq = wq.astype(compute_dtype)

    # Additive-attention cube for this query tile only: (TQ, Lk_p, H_p).
    uh = uh_ref[...]
    wuc = wq[:, None, :] + uh[None, :, :]
    wquh = jnp.tanh(wuc)

    # H-reduction: VPU multiply + lane reduce with f32 accumulation.  This overlaps
    # with the EUP-bound tanh in separate VLIW slots (cheaper than the (TQ*Lk,H)@(H,1)
    # MXU mapping at realistic shapes).
    v_row = v_ref[...]                                            # (1, H_p)
    scores = jnp.sum(wquh * v_row, axis=-1, dtype=jnp.float32)    # (TQ, Lk_p) f32

    # Mask zero-padded key positions before the softmax.
    lk_pad = scores.shape[-1]
    if lk_pad != lk_actual:
        k_idx = jax.lax.broadcasted_iota(jnp.int32, scores.shape, 1)
        scores = jnp.where(k_idx < lk_actual, scores, jnp.float32(-1e30))

    # Softmax over the key axis, in f32.
    m = jnp.max(scores, axis=-1, keepdims=True)
    p = jnp.exp(scores - m)
    denom = jnp.sum(p, axis=-1, keepdims=True)
    attn = p * pl.reciprocal(denom, approx=False)                 # (TQ, Lk_p) f32
    attn_ref[0] = attn.astype(attn_ref.dtype)

    # Weighted value sum on the MXU (bf16 operands, f32 accumulation).
    out = jnp.dot(attn.astype(jnp.bfloat16), val_ref[0],
                  preferred_element_type=jnp.float32)             # (TQ, Dv_p) f32
    out_ref[0] = out.astype(out_ref.dtype)


def bilinear_attention(query, key, value, wq, bq, wk, v, *,
                       compute_dtype=None, q_tile=None):
    """query:(B,Lq,Dq) key:(B,Lk,Dk) value:(B,Lk,Dv)
       wq:(H,Dq) bq:(H,) wk:(H,Dk) v:(H,)  (PyTorch nn.Linear layout).
       Returns (attn_value (B,Lq,Dv) f32, attn (B,Lq,Lk) f32)."""
    B, Lq, Dq = query.shape
    _, Lk, Dk = key.shape
    Dv = value.shape[-1]
    H = wq.shape[0]

    if compute_dtype is None:
        # v5e has no bf16 VPU/EUP path: keep the tanh/add in f32 there; bf16 on v6e/v7x.
        try:
            kind = jax.devices()[0].device_kind.lower()
        except Exception:
            kind = ""
        compute_dtype = jnp.float32 if "v5" in kind else jnp.bfloat16

    # Lane-dense padding: every lane-mapped dim becomes a multiple of 128.
    dq_p = _round_up(Dq, LANE)
    dk_p = _round_up(Dk, LANE)
    dv_p = _round_up(Dv, LANE)
    h_p = _round_up(H, LANE)
    lk_p = _round_up(Lk, LANE)

    # Query tile size: as large as possible while the (TQ, Lk_p, H_p) cube stays
    # comfortably inside VMEM (conservative enough for v7x's 64 MiB).
    esize = jnp.dtype(compute_dtype).itemsize
    cube_budget = 4 * 1024 * 1024
    if q_tile is None:
        tq = 128
        while tq > SUBLANE and tq * lk_p * h_p * esize > cube_budget:
            tq //= 2
        tq = min(tq, _round_up(Lq, SUBLANE))
    else:
        tq = q_tile
    lq_p = _round_up(Lq, tq)
    n_q_tiles = lq_p // tq

    f32 = jnp.float32
    bf16 = jnp.bfloat16

    # Pad + cast operands.  MXU matmul operands are bf16 (native MXU path, f32 accum);
    # the bias stays f32; the scoring vector follows the elementwise compute dtype.
    q_p = _pad_to(query.astype(bf16), (B, lq_p, dq_p))
    k_p = _pad_to(key.astype(bf16), (B, lk_p, dk_p))
    val_p = _pad_to(value.astype(bf16), (B, lk_p, dv_p))
    wq_t = _pad_to(wq.T.astype(bf16), (dq_p, h_p))
    wk_t = _pad_to(wk.T.astype(bf16), (dk_p, h_p))
    bq_2d = _pad_to(bq.astype(f32).reshape(1, H), (1, h_p))
    v_2d = _pad_to(v.astype(compute_dtype).reshape(1, H), (1, h_p))

    out_shapes = (
        jax.ShapeDtypeStruct((B, lq_p, dv_p), f32),
        jax.ShapeDtypeStruct((B, lq_p, lk_p), f32),
    )

    grid_spec = pltpu.PrefetchScalarGridSpec(
        num_scalar_prefetch=0,
        grid=(B, n_q_tiles),
        in_specs=[
            pl.BlockSpec((1, tq, dq_p), lambda b, qi: (b, qi, 0)),
            pl.BlockSpec((1, lk_p, dk_p), lambda b, qi: (b, 0, 0)),
            pl.BlockSpec((1, lk_p, dv_p), lambda b, qi: (b, 0, 0)),
            pl.BlockSpec((dq_p, h_p), lambda b, qi: (0, 0)),
            pl.BlockSpec((1, h_p), lambda b, qi: (0, 0)),
            pl.BlockSpec((dk_p, h_p), lambda b, qi: (0, 0)),
            pl.BlockSpec((1, h_p), lambda b, qi: (0, 0)),
        ],
        out_specs=[
            pl.BlockSpec((1, tq, dv_p), lambda b, qi: (b, qi, 0)),
            pl.BlockSpec((1, tq, lk_p), lambda b, qi: (b, qi, 0)),
        ],
        scratch_shapes=[pltpu.VMEM((lk_p, h_p), compute_dtype)],
    )

    kernel = functools.partial(_bilinear_attn_kernel,
                               lk_actual=Lk, compute_dtype=compute_dtype)

    out_p, attn_p = pl.pallas_call(
        kernel,
        out_shape=out_shapes,
        grid_spec=grid_spec,
        compiler_params=pltpu.CompilerParams(
            # q-tile axis carries the per-batch uh scratch -> "arbitrary";
            # batch axis can shard across v7x's two TensorCores.
            dimension_semantics=("parallel", "arbitrary"),
            vmem_limit_bytes=48 * 1024 * 1024,
        ),
    )(q_p, k_p, val_p, wq_t, bq_2d, wk_t, v_2d)

    return out_p[:, :Lq, :Dv], attn_p[:, :Lq, :Lk]


def _reference(query, key, value, wq, bq, wk, v):
    wq_proj = jnp.einsum('bqd,hd->bqh', query, wq) + bq            # (B,Lq,H)
    uh_proj = jnp.einsum('bkd,hd->bkh', key, wk)                   # (B,Lk,H)
    wuc = wq_proj[:, :, None, :] + uh_proj[:, None, :, :]          # (B,Lq,Lk,H)
    scores = jnp.einsum('bqkh,h->bqk', jnp.tanh(wuc), v)           # (B,Lq,Lk)
    attn = jax.nn.softmax(scores, axis=2)
    out = jnp.einsum('bqk,bkd->bqd', attn, value)
    return out, attn


if __name__ == "__main__":
    # Small, module-consistent shapes.
    B, Lq, Lk = 2, 8, 8
    query_size, key_size, value_size, hidden_size = 16, 24, 32, 32

    root = jax.random.PRNGKey(0)
    kq, kk, kv, kwq, kbq, kwk, kvv = jax.random.split(root, 7)

    query = jax.random.normal(kq, (B, Lq, query_size), dtype=jnp.float32)
    key = jax.random.normal(kk, (B, Lk, key_size), dtype=jnp.float32)
    value = jax.random.normal(kv, (B, Lk, value_size), dtype=jnp.float32)

    # nn.Linear weight layout: (out_features, in_features).
    wq = 0.1 * jax.random.normal(kwq, (hidden_size, query_size), dtype=jnp.float32)
    bq = 0.1 * jax.random.normal(kbq, (hidden_size,), dtype=jnp.float32)
    wk = 0.1 * jax.random.normal(kwk, (hidden_size, key_size), dtype=jnp.float32)
    v = 0.1 * jax.random.normal(kvv, (hidden_size,), dtype=jnp.float32)

    out, attn = bilinear_attention(query, key, value, wq, bq, wk, v)
    jax.block_until_ready((out, attn))

    ref_out, ref_attn = _reference(query, key, value, wq, bq, wk, v)
    # Tolerances account for bf16 MXU operands / bf16 tanh path (f32 accumulation).
    assert out.shape == (B, Lq, value_size) and attn.shape == (B, Lq, Lk)
    assert jnp.allclose(attn, ref_attn, atol=1.5e-2, rtol=1.5e-2)
    assert jnp.allclose(out, ref_out, atol=3e-2, rtol=3e-2)
    assert jnp.allclose(jnp.sum(attn, axis=2), 1.0, atol=1e-4)

    print("KERNEL_OK")
</pallas_src>

<mosaic_0001>
module attributes {stable_mosaic.version = 11 : i64} {
  func.func @_bilinear_attn_kernel(%arg0: i32, %arg1: i32, %arg2: memref<1x8x128xbf16, #tpu.memory_space<vmem>>, %arg3: memref<1x128x128xbf16, #tpu.memory_space<vmem>>, %arg4: memref<1x128x128xbf16, #tpu.memory_space<vmem>>, %arg5: memref<128x128xbf16, #tpu.memory_space<vmem>>, %arg6: memref<1x128xf32, #tpu.memory_space<vmem>>, %arg7: memref<128x128xbf16, #tpu.memory_space<vmem>>, %arg8: memref<1x128xbf16, #tpu.memory_space<vmem>>, %arg9: memref<1x8x128xf32, #tpu.memory_space<vmem>>, %arg10: memref<1x8x128xf32, #tpu.memory_space<vmem>>, %arg11: memref<128x128xbf16, #tpu.memory_space<vmem>>) attributes {dimension_semantics = [#tpu.dimension_semantics<parallel>, #tpu.dimension_semantics<arbitrary>], iteration_bounds = array<i64: 2, 1>, scalar_prefetch = 0 : i64, scratch_operands = 1 : i64, tpu.core_type = #tpu.core_type<tc>, window_params = [{transform_indices = @transform_0, window_bounds = array<i64: 1, 8, 128>}, {transform_indices = @transform_1, window_bounds = array<i64: 1, 128, 128>}, {transform_indices = @transform_2, window_bounds = array<i64: 1, 128, 128>}, {pipeline_mode = #tpu.pipeline_mode<synchronous>, transform_indices = @transform_3, window_bounds = array<i64: 128, 128>}, {pipeline_mode = #tpu.pipeline_mode<synchronous>, transform_indices = @transform_4, window_bounds = array<i64: 1, 128>}, {pipeline_mode = #tpu.pipeline_mode<synchronous>, transform_indices = @transform_5, window_bounds = array<i64: 128, 128>}, {pipeline_mode = #tpu.pipeline_mode<synchronous>, transform_indices = @transform_6, window_bounds = array<i64: 1, 128>}, {transform_indices = @transform_7, window_bounds = array<i64: 1, 8, 128>}, {transform_indices = @transform_8, window_bounds = array<i64: 1, 8, 128>}]} {
    %c0_i32 = arith.constant 0 : i32
    %0 = arith.cmpi eq, %arg1, %c0_i32 : i32
    %1 = arith.extui %0 : i1 to i32
    %c0_i32_0 = arith.constant 0 : i32
    %2 = arith.cmpi ne, %1, %c0_i32_0 : i32
    scf.if %2 {
      %c0_25 = arith.constant 0 : index
      %c0_26 = arith.constant 0 : index
      %c0_27 = arith.constant 0 : index
      %49 = vector.load %arg3[%c0_25, %c0_26, %c0_27] : memref<1x128x128xbf16, #tpu.memory_space<vmem>>, vector<1x128x128xbf16>
      %50 = vector.shape_cast %49 : vector<1x128x128xbf16> to vector<128x128xbf16>
      %c0_28 = arith.constant 0 : index
      %c0_29 = arith.constant 0 : index
      %51 = vector.load %arg7[%c0_28, %c0_29] : memref<128x128xbf16, #tpu.memory_space<vmem>>, vector<128x128xbf16>
      %cst_30 = arith.constant dense<0.000000e+00> : vector<128x128xf32>
      %52 = tpu.matmul %50, %51, %cst_30 {dimension_numbers = #tpu.dot_dimension_numbers<[1], [0], [0], [1], [0, 0, 1, 1], [], []>} : vector<128x128xbf16>, vector<128x128xbf16>, vector<128x128xf32> -> vector<128x128xf32>
      %53 = arith.truncf %52 : vector<128x128xf32> to vector<128x128xbf16>
      %c0_31 = arith.constant 0 : index
      %c0_32 = arith.constant 0 : index
      %54 = vector.load %arg11[%c0_31, %c0_32] : memref<128x128xbf16, #tpu.memory_space<vmem>>, vector<128x128xbf16>
      tpu.vector_store %arg11[%c0_31, %c0_32], %53 {strides = array<i32>} : memref<128x128xbf16, #tpu.memory_space<vmem>>, vector<128x128xbf16>,
    } else {
    }
    %c0 = arith.constant 0 : index
    %c0_1 = arith.constant 0 : index
    %c0_2 = arith.constant 0 : index
    %3 = vector.load %arg2[%c0, %c0_1, %c0_2] : memref<1x8x128xbf16, #tpu.memory_space<vmem>>, vector<1x8x128xbf16>
    %4 = vector.shape_cast %3 : vector<1x8x128xbf16> to vector<8x128xbf16>
    %c0_3 = arith.constant 0 : index
    %c0_4 = arith.constant 0 : index
    %5 = vector.load %arg5[%c0_3, %c0_4] : memref<128x128xbf16, #tpu.memory_space<vmem>>, vector<128x128xbf16>
    %cst = arith.constant dense<0.000000e+00> : vector<8x128xf32>
    %6 = tpu.matmul %4, %5, %cst {dimension_numbers = #tpu.dot_dimension_numbers<[1], [0], [0], [1], [0, 0, 1, 1], [], []>} : vector<8x128xbf16>, vector<128x128xbf16>, vector<8x128xf32> -> vector<8x128xf32>
    %c0_5 = arith.constant 0 : index
    %c0_6 = arith.constant 0 : index
    %7 = vector.load %arg6[%c0_5, %c0_6] : memref<1x128xf32, #tpu.memory_space<vmem>>, vector<1x128xf32>
    %8 = vector.broadcast %7 : vector<1x128xf32> to vector<8x128xf32>
    %9 = arith.addf %6, %8 : vector<8x128xf32>
    %10 = arith.truncf %9 : vector<8x128xf32> to vector<8x128xbf16>
    %c0_7 = arith.constant 0 : index
    %c0_8 = arith.constant 0 : index
    %11 = vector.load %arg11[%c0_7, %c0_8] : memref<128x128xbf16, #tpu.memory_space<vmem>>, vector<128x128xbf16>
    %12 = vector.shape_cast %10 : vector<8x128xbf16> to vector<8x1x128xbf16>
    %13 = vector.shape_cast %11 : vector<128x128xbf16> to vector<1x128x128xbf16>
    %14 = vector.broadcast %12 : vector<8x1x128xbf16> to vector<8x128x128xbf16>
    %15 = vector.broadcast %13 : vector<1x128x128xbf16> to vector<8x128x128xbf16>
    %16 = arith.addf %14, %15 : vector<8x128x128xbf16>
    %17 = math.tanh %16 : vector<8x128x128xbf16>
    %c0_9 = arith.constant 0 : index
    %c0_10 = arith.constant 0 : index
    %18 = vector.load %arg8[%c0_9, %c0_10] : memref<1x128xbf16, #tpu.memory_space<vmem>>, vector<1x128xbf16>
    %19 = vector.shape_cast %18 : vector<1x128xbf16> to vector<1x1x128xbf16>
    %20 = vector.broadcast %19 : vector<1x1x128xbf16> to vector<8x128x128xbf16>
    %21 = arith.mulf %17, %20 : vector<8x128x128xbf16>
    %22 = arith.extf %21 : vector<8x128x128xbf16> to vector<8x128x128xf32>
    %cst_11 = arith.constant dense<0.000000e+00> : vector<8x128xf32>
    %23 = vector.multi_reduction <add>, %22, %cst_11 [2] : vector<8x128x128xf32> to vector<8x128xf32>
    %24 = tpu.iota {dimensions = array<i32: 1>} : vector<8x128xi32>
    %c8_i32 = arith.constant 8 : i32
    %25 = vector.broadcast %c8_i32 : i32 to vector<8x128xi32>
    %26 = arith.cmpi slt, %24, %25 : vector<8x128xi32>
    %cst_12 = arith.constant -1.000000e+30 : f32
    %27 = vector.broadcast %cst_12 : f32 to vector<8x128xf32>
    %28 = arith.select %26, %23, %27 : vector<8x128xi1>, vector<8x128xf32>
    %cst_13 = arith.constant dense<0xFF800000> : vector<8xf32>
    %29 = vector.multi_reduction <maximumf>, %28, %cst_13 [1] : vector<8x128xf32> to vector<8xf32>
    %30 = vector.shape_cast %29 : vector<8xf32> to vector<8x1xf32>
    %31 = vector.broadcast %30 : vector<8x1xf32> to vector<8x128xf32>
    %32 = arith.subf %28, %31 : vector<8x128xf32>
    %33 = math.exp %32 : vector<8x128xf32>
    %cst_14 = arith.constant dense<0.000000e+00> : vector<8xf32>
    %34 = vector.multi_reduction <add>, %33, %cst_14 [1] : vector<8x128xf32> to vector<8xf32>
    %35 = vector.shape_cast %34 : vector<8xf32> to vector<8x1xf32>
    %36 = tpu.reciprocal %35 : vector<8x1xf32> -> vector<8x1xf32>
    %37 = vector.broadcast %36 : vector<8x1xf32> to vector<8x128xf32>
    %38 = arith.mulf %33, %37 : vector<8x128xf32>
    %c0_15 = arith.constant 0 : index
    %c0_16 = arith.constant 0 : index
    %c0_17 = arith.constant 0 : index
    %39 = vector.load %arg10[%c0_15, %c0_16, %c0_17] : memref<1x8x128xf32, #tpu.memory_space<vmem>>, vector<1x8x128xf32>
    %40 = vector.shape_cast %39 : vector<1x8x128xf32> to vector<8x128xf32>
    %41 = vector.shape_cast %38 : vector<8x128xf32> to vector<1x8x128xf32>
    tpu.vector_store %arg10[%c0_15, %c0_16, %c0_17], %41 {strides = array<i32>} : memref<1x8x128xf32, #tpu.memory_space<vmem>>, vector<1x8x128xf32>,
    %42 = arith.truncf %38 : vector<8x128xf32> to vector<8x128xbf16>
    %c0_18 = arith.constant 0 : index
    %c0_19 = arith.constant 0 : index
    %c0_20 = arith.constant 0 : index
    %43 = vector.load %arg4[%c0_18, %c0_19, %c0_20] : memref<1x128x128xbf16, #tpu.memory_space<vmem>>, vector<1x128x128xbf16>
    %44 = vector.shape_cast %43 : vector<1x128x128xbf16> to vector<128x128xbf16>
    %cst_21 = arith.constant dense<0.000000e+00> : vector<8x128xf32>
    %45 = tpu.matmul %42, %44, %cst_21 {dimension_numbers = #tpu.dot_dimension_numbers<[1], [0], [0], [1], [0, 0, 1, 1], [], []>} : vector<8x128xbf16>, vector<128x128xbf16>, vector<8x128xf32> -> vector<8x128xf32>
    %c0_22 = arith.constant 0 : index
    %c0_23 = arith.constant 0 : index
    %c0_24 = arith.constant 0 : index
    %46 = vector.load %arg9[%c0_22, %c0_23, %c0_24] : memref<1x8x128xf32, #tpu.memory_space<vmem>>, vector<1x8x128xf32>
    %47 = vector.shape_cast %46 : vector<1x8x128xf32> to vector<8x128xf32>
    %48 = vector.shape_cast %45 : vector<8x128xf32> to vector<1x8x128xf32>
    tpu.vector_store %arg9[%c0_22, %c0_23, %c0_24], %48 {strides = array<i32>} : memref<1x8x128xf32, #tpu.memory_space<vmem>>, vector<1x8x128xf32>,
    return
  }
  func.func @transform_0(%arg0: i32, %arg1: i32) -> (i32, i32, i32) {
    %c0_i32 = arith.constant 0 : i32
    %c0_i32_0 = arith.constant 0 : i32
    return %arg0, %arg1, %c0_i32 : i32, i32, i32
  }
  func.func @transform_1(%arg0: i32, %arg1: i32) -> (i32, i32, i32) {
    %c0_i32 = arith.constant 0 : i32
    %c0_i32_0 = arith.constant 0 : i32
    %c0_i32_1 = arith.constant 0 : i32
    return %arg0, %c0_i32, %c0_i32_0 : i32, i32, i32
  }
  func.func @transform_2(%arg0: i32, %arg1: i32) -> (i32, i32, i32) {
    %c0_i32 = arith.constant 0 : i32
    %c0_i32_0 = arith.constant 0 : i32
    %c0_i32_1 = arith.constant 0 : i32
    return %arg0, %c0_i32, %c0_i32_0 : i32, i32, i32
  }
  func.func @transform_3(%arg0: i32, %arg1: i32) -> (i32, i32) {
    %c0_i32 = arith.constant 0 : i32
    %c0_i32_0 = arith.constant 0 : i32
    %c0_i32_1 = arith.constant 0 : i32
    return %c0_i32, %c0_i32_0 : i32, i32
  }
  func.func @transform_4(%arg0: i32, %arg1: i32) -> (i32, i32) {
    %c0_i32 = arith.constant 0 : i32
    %c0_i32_0 = arith.constant 0 : i32
    %c0_i32_1 = arith.constant 0 : i32
    return %c0_i32, %c0_i32_0 : i32, i32
  }
  func.func @transform_5(%arg0: i32, %arg1: i32) -> (i32, i32) {
    %c0_i32 = arith.constant 0 : i32
    %c0_i32_0 = arith.constant 0 : i32
    %c0_i32_1 = arith.constant 0 : i32
    return %c0_i32, %c0_i32_0 : i32, i32
  }
  func.func @transform_6(%arg0: i32, %arg1: i32) -> (i32, i32) {
    %c0_i32 = arith.constant 0 : i32
    %c0_i32_0 = arith.constant 0 : i32
    %c0_i32_1 = arith.constant 0 : i32
    return %c0_i32, %c0_i32_0 : i32, i32
  }
  func.func @transform_7(%arg0: i32, %arg1: i32) -> (i32, i32, i32) {
    %c0_i32 = arith.constant 0 : i32
    %c0_i32_0 = arith.constant 0 : i32
    return %arg0, %arg1, %c0_i32 : i32, i32, i32
  }
  func.func @transform_8(%arg0: i32, %arg1: i32) -> (i32, i32, i32) {
    %c0_i32 = arith.constant 0 : i32
    %c0_i32_0 = arith.constant 0 : i32
    return %arg0, %arg1, %c0_i32 : i32, i32, i32
  }
}

</mosaic_0001>

<llo_original>
// kernel: tpu_custom_call.1
$region0: #{tpu_custom_call.1}
  #allocation0 [shape = 'u32[]', space=smem, size = 0x4, offset = 0x4, fixed_abs, tag = 'smem constant byte address 0x4 - core index']
  #allocation1 [shape = 'u32[144,128]{1,0:T(1,128)}', space=vmem, size = 0x12000, scoped, tag = 'internal scratch']
  #allocation2 [shape = 'bf16[128,128]{1,0:T(16,128)(2,1)}', space=vmem, size = 0x8000, scoped, tag = 'scratch operand']
  %s0 = inlined_call_operand.hbm [shape: bf16[2,8,128], index: 0, kind: input, shape index: {}]
  %s1 = inlined_call_operand.hbm [shape: bf16[2,128,128], index: 1, kind: input, shape index: {}]
  %s2 = inlined_call_operand.hbm [shape: bf16[2,128,128], index: 2, kind: input, shape index: {}]
  %s3 = inlined_call_operand.hbm [shape: bf16[128,128], index: 3, kind: input, shape index: {}]
  %s4 = inlined_call_operand.vmem [shape: f32[1,128], index: 4, kind: input, shape index: {}]
  %s5 = inlined_call_operand.hbm [shape: bf16[128,128], index: 5, kind: input, shape index: {}]
  %s6 = inlined_call_operand.vmem [shape: bf16[1,128], index: 6, kind: input, shape index: {}]
  %s7 = inlined_call_operand.hbm [shape: f32[2,8,128], index: 7, kind: output, shape index: {0}]
  %s8 = inlined_call_operand.hbm [shape: f32[2,8,128], index: 8, kind: output, shape index: {1}]
  %9 = xla_tuple %s7, %s8
  %s10 = sld [smem:[#allocation0]]
  $region93: #{tpu_custom_call.1} parent=0
    _
  %s12 = ssub.s32 1, %s10
  %s13 = scalar_select 0, %s12, %s10
  $region1: #{tpu_custom_call.1} parent=0
    #allocation3 [shape = 'u8[4096]{0}', space=vmem, size = 0x1000, scoped, tag = 'input window, operand 0']
    #allocation4 [shape = 's32[2]{0}', space=sflag, size = 0x8, scoped, tag = 'scoped memory for tpu_custom_call.1']
    #allocation5 [shape = 's32[2]{0}', space=sflag, size = 0x8, scoped, tag = 'scoped memory for tpu_custom_call.1']
    #allocation6 [shape = 'u8[65536]{0}', space=vmem, size = 0x10000, scoped, tag = 'input window, operand 1']
    #allocation7 [shape = 's32[2]{0}', space=sflag, size = 0x8, scoped, tag = 'scoped memory for tpu_custom_call.1']
    #allocation8 [shape = 'u8[65536]{0}', space=vmem, size = 0x10000, scoped, tag = 'input window, operand 2']
    #allocation9 [shape = 'u8[32768]{0}', space=vmem, size = 0x8000, scoped, tag = 'input window, operand 3, single buffered']
    #allocation10 [shape = 's32[1]{0}', space=sflag, size = 0x4, scoped, tag = 'scoped memory for tpu_custom_call.1']
    #allocation11 [shape = 'u8[32768]{0}', space=vmem, size = 0x8000, scoped, tag = 'input window, operand 5, single buffered']
    #allocation12 [shape = 'u8[8192]{0}', space=vmem, size = 0x2000, scoped, tag = 'output window, operand 0']
    #allocation13 [shape = 'u8[8192]{0}', space=vmem, size = 0x2000, scoped, tag = 'output window, operand 1']
    #allocation14 [shape = 's32[2]{0}', space=sflag, size = 0x8, scoped, tag = 'scoped memory for tpu_custom_call.1']
    %14 = vsyncpa [#allocation4], 0
    %s15 = scalar_lea.sflag [#allocation4], 1
    %16 = vsyncpa %s15, 0
    %17 = vsyncpa [#allocation7], 0
    %s18 = scalar_lea.sflag [#allocation7], 1
    %19 = vsyncpa %s18, 0
    %20 = vsyncpa [#allocation10], 0
    %21 = vsyncpa [#allocation5], 0
    %s22 = scalar_lea.sflag [#allocation5], 1
    %23 = vsyncpa %s22, 0
    %24 = vsyncpa [#allocation14], 0
    %s25 = scalar_lea.sflag [#allocation14], 1
    %26 = vsyncpa %s25, 0
    loop: start=0, step=1, limit=4
    $region2: #{tpu_custom_call.1} parent=1 // loop_pre_header
      _
    $region3: #{tpu_custom_call.1} parent=1 // loop_header
      %s28 = sphi 0, %s32
      %p29 = scmp.ge.s32.totalorder %s28, 4
      %s35 = sphi 0, %s47
      %s36 = sphi 0, %s43
      %s37 = sphi 0, %s35
      %s38 = sphi 0, %s36
      %s39 = sphi 0, %s37
      %s40 = sphi 0, %s38
      %s52 = sphi 0, %s54
      %s55 = sphi 0, %s52
      %s56 = sphi 0, %s55
      %s72 = sphi 0, %s56
      %s78 = sphi 0, %s80
      %s81 = sphi 0, %s78
      %s82 = sphi 0, %s81
      %s98 = sphi 0, %s82
      %s104 = sphi 0, %s106
      %s107 = sphi 0, %s104
      %s108 = sphi 0, %s107
      %s124 = sphi 0, %s108
      %s128 = sphi 0, %s128
      %s130 = sphi 0, %s128
      %s131 = sphi 0, %s130
      %s145 = sphi 0, %s131
      %s149 = sphi 0, %s149
      %s151 = sphi 0, %s149
      %s152 = sphi 0, %s151
      %s166 = sphi 0, %s152
      %s170 = sphi 0, %s170
      %s172 = sphi 0, %s170
      %s173 = sphi 0, %s172
      %s187 = sphi 0, %s173
      %s191 = sphi 0, %s191
      %s193 = sphi 0, %s191
      %s194 = sphi 0, %s193
      %s208 = sphi 0, %s194
      %s216 = sphi 0, %s218
      %s219 = sphi 0, %s216
      %s220 = sphi 0, %s219
      %s236 = sphi 0, %s220
      %s244 = sphi 0, %s246
      %s247 = sphi 0, %s244
      %s248 = sphi 0, %s247
      %s264 = sphi 0, %s248
    $region4: #{tpu_custom_call.1} parent=1 // loop_header_branch
      %31 = sbr.rel (%p29) target = $region8
    $region5: #{tpu_custom_call.1} parent=1 // loop_body
      %s33 = ssub.s32 %s28, 1
      %s34 = ssub.s32 %s28, 2
      %s41 = sadd.s32 1, %s36
      %p42 = scmp.ge.s32.totalorder %s41, 1
      %s43 = scalar_select %p42, 0, %s41
      %s44 = sadd.s32 1, %s35
      %s45 = scalar_select %p42, %s44, %s35
      %p46 = scmp.ge.s32.totalorder %s45, 2
      %s47 = scalar_select %p46, 0, %s45
      %s48 = ssub.s32 %s35, %s47
      %s49 = ssub.s32 %s36, %s43
      %s50 = sor.u32 %s48, %s49
      %p51 = scmp.eq.s32.totalorder %s50, 0
      %s53 = sadd.s32 %s52, 1
      %s54 = scalar_select %p51, %s52, %s53
      %p57 = pneg %p51
      %p58 = scmp.eq.s32.totalorder %s28, 1
      %p59 = por %p57, %p58
      %p60 = scmp.ne.s32.totalorder %s52, %s55
      %p61 = scmp.eq.s32.totalorder %s28, 0
      %p62 = por %p60, %p61
      %p63 = scmp.ne.s32.totalorder %s52, %s55
      %p64 = scmp.eq.s32.totalorder %s33, 1
      %p65 = por %p63, %p64
      %p66 = scmp.ne.s32.totalorder %s55, %s56
      %p67 = scmp.eq.s32.totalorder %s33, 0
      %p68 = por %p66, %p67
      %p69 = scmp.ne.s32.totalorder %s55, %s56
      %p70 = scmp.eq.s32.totalorder %s34, 1
      %p71 = por %p69, %p70
      %p73 = scmp.ne.s32.totalorder %s56, %s72
      %p74 = scmp.eq.s32.totalorder %s34, 0
      %p75 = por %p73, %p74
      %s76 = ssub.s32 %s35, %s47
      %p77 = scmp.eq.s32.totalorder %s76, 0
      %s79 = sadd.s32 %s78, 1
      %s80 = scalar_select %p77, %s78, %s79
      %p83 = pneg %p77
      %p84 = scmp.eq.s32.totalorder %s28, 1
      %p85 = por %p83, %p84
      %p86 = scmp.ne.s32.totalorder %s78, %s81
      %p87 = scmp.eq.s32.totalorder %s28, 0
      %p88 = por %p86, %p87
      %p89 = scmp.ne.s32.totalorder %s78, %s81
      %p90 = scmp.eq.s32.totalorder %s33, 1
      %p91 = por %p89, %p90
      %p92 = scmp.ne.s32.totalorder %s81, %s82
      %p93 = scmp.eq.s32.totalorder %s33, 0
      %p94 = por %p92, %p93
      %p95 = scmp.ne.s32.totalorder %s81, %s82
      %p96 = scmp.eq.s32.totalorder %s34, 1
      %p97 = por %p95, %p96
      %p99 = scmp.ne.s32.totalorder %s82, %s98
      %p100 = scmp.eq.s32.totalorder %s34, 0
      %p101 = por %p99, %p100
      %s102 = ssub.s32 %s35, %s47
      %p103 = scmp.eq.s32.totalorder %s102, 0
      %s105 = sadd.s32 %s104, 1
      %s106 = scalar_select %p103, %s104, %s105
      %p109 = pneg %p103
      %p110 = scmp.eq.s32.totalorder %s28, 1
      %p111 = por %p109, %p110
      %p112 = scmp.ne.s32.totalorder %s104, %s107
      %p113 = scmp.eq.s32.totalorder %s28, 0
      %p114 = por %p112, %p113
      %p115 = scmp.ne.s32.totalorder %s104, %s107
      %p116 = scmp.eq.s32.totalorder %s33, 1
      %p117 = por %p115, %p116
      %p118 = scmp.ne.s32.totalorder %s107, %s108
      %p119 = scmp.eq.s32.totalorder %s33, 0
      %p120 = por %p118, %p119
      %p121 = scmp.ne.s32.totalorder %s107, %s108
      %p122 = scmp.eq.s32.totalorder %s34, 1
      %p123 = por %p121, %p122
      %p125 = scmp.ne.s32.totalorder %s108, %s124
      %p126 = scmp.eq.s32.totalorder %s34, 0
      %p127 = por %p125, %p126
      %s129 = sadd.s32 %s128, 1
      %p132 = scmp.eq.s32.totalorder %s28, 1
      %p133 = scmp.ne.s32.totalorder %s128, %s130
      %p134 = scmp.eq.s32.totalorder %s28, 0
      %p135 = por %p133, %p134
      %p136 = scmp.ne.s32.totalorder %s128, %s130
      %p137 = scmp.eq.s32.totalorder %s33, 1
      %p138 = por %p136, %p137
      %p139 = scmp.ne.s32.totalorder %s130, %s131
      %p140 = scmp.eq.s32.totalorder %s33, 0
      %p141 = por %p139, %p140
      %p142 = scmp.ne.s32.totalorder %s130, %s131
      %p143 = scmp.eq.s32.totalorder %s34, 1
      %p144 = por %p142, %p143
      %p146 = scmp.ne.s32.totalorder %s131, %s145
      %p147 = scmp.eq.s32.totalorder %s34, 0
      %p148 = por %p146, %p147
      %s150 = sadd.s32 %s149, 1
      %p153 = scmp.eq.s32.totalorder %s28, 1
      %p154 = scmp.ne.s32.totalorder %s149, %s151
      %p155 = scmp.eq.s32.totalorder %s28, 0
      %p156 = por %p154, %p155
      %p157 = scmp.ne.s32.totalorder %s149, %s151
      %p158 = scmp.eq.s32.totalorder %s33, 1
      %p159 = por %p157, %p158
      %p160 = scmp.ne.s32.totalorder %s151, %s152
      %p161 = scmp.eq.s32.totalorder %s33, 0
      %p162 = por %p160, %p161
      %p163 = scmp.ne.s32.totalorder %s151, %s152
      %p164 = scmp.eq.s32.totalorder %s34, 1
      %p165 = por %p163, %p164
      %p167 = scmp.ne.s32.totalorder %s152, %s166
      %p168 = scmp.eq.s32.totalorder %s34, 0
      %p169 = por %p167, %p168
      %s171 = sadd.s32 %s170, 1
      %p174 = scmp.eq.s32.totalorder %s28, 1
      %p175 = scmp.ne.s32.totalorder %s170, %s172
      %p176 = scmp.eq.s32.totalorder %s28, 0
      %p177 = por %p175, %p176
      %p178 = scmp.ne.s32.totalorder %s170, %s172
      %p179 = scmp.eq.s32.totalorder %s33, 1
      %p180 = por %p178, %p179
      %p181 = scmp.ne.s32.totalorder %s172, %s173
      %p182 = scmp.eq.s32.totalorder %s33, 0
      %p183 = por %p181, %p182
      %p184 = scmp.ne.s32.totalorder %s172, %s173
      %p185 = scmp.eq.s32.totalorder %s34, 1
      %p186 = por %p184, %p185
      %p188 = scmp.ne.s32.totalorder %s173, %s187
      %p189 = scmp.eq.s32.totalorder %s34, 0
      %p190 = por %p188, %p189
      %s192 = sadd.s32 %s191, 1
      %p195 = scmp.eq.s32.totalorder %s28, 1
      %p196 = scmp.ne.s32.totalorder %s191, %s193
      %p197 = scmp.eq.s32.totalorder %s28, 0
      %p198 = por %p196, %p197
      %p199 = scmp.ne.s32.totalorder %s191, %s193
      %p200 = scmp.eq.s32.totalorder %s33, 1
      %p201 = por %p199, %p200
      %p202 = scmp.ne.s32.totalorder %s193, %s194
      %p203 = scmp.eq.s32.totalorder %s33, 0
      %p204 = por %p202, %p203
      %p205 = scmp.ne.s32.totalorder %s193, %s194
      %p206 = scmp.eq.s32.totalorder %s34, 1
      %p207 = por %p205, %p206
      %p209 = scmp.ne.s32.totalorder %s194, %s208
      %p210 = scmp.eq.s32.totalorder %s34, 0
      %p211 = por %p209, %p210
      %s212 = ssub.s32 %s35, %s47
      %s213 = ssub.s32 %s36, %s43
      %s214 = sor.u32 %s212, %s213
      %p215 = scmp.eq.s32.totalorder %s214, 0
      %s217 = sadd.s32 %s216, 1
      %s218 = scalar_select %p215, %s216, %s217
      %p221 = pneg %p215
      %p222 = scmp.eq.s32.totalorder %s28, 1
      %p223 = por %p221, %p222
      %p224 = scmp.ne.s32.totalorder %s216, %s219
      %p225 = scmp.eq.s32.totalorder %s28, 0
      %p226 = por %p224, %p225
      %p227 = scmp.ne.s32.totalorder %s216, %s219
      %p228 = scmp.eq.s32.totalorder %s33, 1
      %p229 = por %p227, %p228
      %p230 = scmp.ne.s32.totalorder %s219, %s220
      %p231 = scmp.eq.s32.totalorder %s33, 0
      %p232 = por %p230, %p231
      %p233 = scmp.ne.s32.totalorder %s219, %s220
      %p234 = scmp.eq.s32.totalorder %s34, 1
      %p235 = por %p233, %p234
      %p237 = scmp.ne.s32.totalorder %s220, %s236
      %p238 = scmp.eq.s32.totalorder %s34, 0
      %p239 = por %p237, %p238
      %s240 = ssub.s32 %s35, %s47
      %s241 = ssub.s32 %s36, %s43
      %s242 = sor.u32 %s240, %s241
      %p243 = scmp.eq.s32.totalorder %s242, 0
      %s245 = sadd.s32 %s244, 1
      %s246 = scalar_select %p243, %s244, %s245
      %p249 = pneg %p243
      %p250 = scmp.eq.s32.totalorder %s28, 1
      %p251 = por %p249, %p250
      %p252 = scmp.ne.s32.totalorder %s244, %s247
      %p253 = scmp.eq.s32.totalorder %s28, 0
      %p254 = por %p252, %p253
      %p255 = scmp.ne.s32.totalorder %s244, %s247
      %p256 = scmp.eq.s32.totalorder %s33, 1
      %p257 = por %p255, %p256
      %p258 = scmp.ne.s32.totalorder %s247, %s248
      %p259 = scmp.eq.s32.totalorder %s33, 0
      %p260 = por %p258, %p259
      %p261 = scmp.ne.s32.totalorder %s247, %s248
      %p262 = scmp.eq.s32.totalorder %s34, 1
      %p263 = por %p261, %p262
      %p265 = scmp.ne.s32.totalorder %s248, %s264
      %p266 = scmp.eq.s32.totalorder %s34, 0
      %p267 = por %p265, %p266
      %p268 = scmp.le.s32.totalorder 1, %s28
      %p269 = scmp.lt.s32.totalorder %s28, 3
      %p270 = pnand %p268, %p269
      %p271 = pneg %p270
      // Predicated region
      $region9: #{tpu_custom_call.1} parent=5 // pred_check
        _
      $region10: #{tpu_custom_call.1} parent=5 // pred_check_branch
        %273 = sbr.rel (%p270) target = $region12
      $region11: #{tpu_custom_call.1} parent=5 // pred_region
        %s274 = ssub.s32 %s28, 1
        // Predicated region
        $region13: #{tpu_custom_call.1} parent=11 // pred_check
          %p275 = pneg %p141
        $region14: #{tpu_custom_call.1} parent=11 // pred_check_branch
          %277 = sbr.rel (%p275) target = $region16
        $region15: #{tpu_custom_call.1} parent=11 // pred_region
          %s279 = ssub.s32 1024, 1024
          %280 = vsyncadd [#allocation10], %s279
          %s281 = sshll.u32 [#allocation9], 4
          %s282 = int_to_ptr.vmem [resolvable:$true] %s281
          %287 = dma.hbm_to_vmem [thread:$0]  %s3, 1024, %s282, [#allocation10], 64, 64, 4
        $region16: #{tpu_custom_call.1} parent=11 // pred_fallthru
          _
        // Predicated region
        $region17: #{tpu_custom_call.1} parent=11 // pred_check
          %p288 = pneg %p162
        $region18: #{tpu_custom_call.1} parent=11 // pred_check_branch
          %290 = sbr.rel (%p288) target = $region20
        $region19: #{tpu_custom_call.1} parent=11 // pred_region
          _
        $region20: #{tpu_custom_call.1} parent=11 // pred_fallthru
          _
        // Predicated region
        $region21: #{tpu_custom_call.1} parent=11 // pred_check
          %p291 = pneg %p183
        $region22: #{tpu_custom_call.1} parent=11 // pred_check_branch
          %293 = sbr.rel (%p291) target = $region24
        $region23: #{tpu_custom_call.1} parent=11 // pred_region
          %s295 = ssub.s32 1024, 1024
          %296 = vsyncadd [#allocation10], %s295
          %s297 = sshll.u32 [#allocation11], 4
          %s298 = int_to_ptr.vmem [resolvable:$true] %s297
          %303 = dma.hbm_to_vmem [thread:$0]  %s5, 1024, %s298, [#allocation10], 64, 64, 4
        $region24: #{tpu_custom_call.1} parent=11 // pred_fallthru
          _
        // Predicated region
        $region25: #{tpu_custom_call.1} parent=11 // pred_check
          %p304 = pneg %p204
        $region26: #{tpu_custom_call.1} parent=11 // pred_check_branch
          %306 = sbr.rel (%p304) target = $region28
        $region27: #{tpu_custom_call.1} parent=11 // pred_region
          _
        $region28: #{tpu_custom_call.1} parent=11 // pred_fallthru
          _
      $region12: #{tpu_custom_call.1} parent=5 // pred_fallthru
        _
      %p307 = scmp.lt.s32.totalorder %s28, 2
      // Predicated region
      $region29: #{tpu_custom_call.1} parent=5 // pred_check
        %p308 = pneg %p307
      $region30: #{tpu_custom_call.1} parent=5 // pred_check_branch
        %310 = sbr.rel (%p308) target = $region32
      $region31: #{tpu_custom_call.1} parent=5 // pred_region
        // Predicated region
        $region33: #{tpu_custom_call.1} parent=31 // pred_check
          %p311 = pneg %p62
        $region34: #{tpu_custom_call.1} parent=31 // pred_check_branch
          %313 = sbr.rel (%p311) target = $region36
        $region35: #{tpu_custom_call.1} parent=31 // pred_region
          %s314 = sand.u32 %s52, 1
          %s315 = scalar_lea.sflag [#allocation4], %s314
          %s316 = sand.u32 %s52, 1
          %s317 = smul.addr %s316, 4
          %s318 = scalar_lea.vmem [#allocation3], %s317
          %s320 = ssub.s32 64, 64
          %321 = vsyncadd %s315, %s320
          %s322 = sadd.s32 %s36, %s35
          %s323 = smul.addr %s322, 64
          %s324 = scalar_lea.hbm %s0, %s323
          %s326 = sshll.u32 %s318, 4
          %s327 = int_to_ptr.vmem [resolvable:$true] %s326
          %329 = dma.hbm_to_vmem [thread:$0]  %s324, 64, %s327, %s315
        $region36: #{tpu_custom_call.1} parent=31 // pred_fallthru
          _
        // Predicated region
        $region37: #{tpu_custom_call.1} parent=31 // pred_check
          %p330 = pneg %p88
        $region38: #{tpu_custom_call.1} parent=31 // pred_check_branch
          %332 = sbr.rel (%p330) target = $region40
        $region39: #{tpu_custom_call.1} parent=31 // pred_region
          %s333 = sand.u32 %s28, 1
          %s334 = scalar_lea.sflag [#allocation7], %s333
          %s335 = sand.u32 %s78, 1
          %s336 = smul.addr %s335, 64
          %s337 = scalar_lea.vmem [#allocation6], %s336
          %s339 = ssub.s32 1024, 1024
          %340 = vsyncadd %s334, %s339
          %s341 = smul.addr %s35, 16
          %s342 = smul.addr %s341, 64
          %s343 = scalar_lea.hbm %s1, %s342
          %s344 = sshll.u32 %s337, 4
          %s345 = int_to_ptr.vmem [resolvable:$true] %s344
          %350 = dma.hbm_to_vmem [thread:$0]  %s343, 1024, %s345, %s334, 64, 64, 4
        $region40: #{tpu_custom_call.1} parent=31 // pred_fallthru
          _
        // Predicated region
        $region41: #{tpu_custom_call.1} parent=31 // pred_check
          %p351 = pneg %p114
        $region42: #{tpu_custom_call.1} parent=31 // pred_check_branch
          %353 = sbr.rel (%p351) target = $region44
        $region43: #{tpu_custom_call.1} parent=31 // pred_region
          %s354 = sand.u32 %s28, 1
          %s355 = scalar_lea.sflag [#allocation7], %s354
          %s356 = sand.u32 %s104, 1
          %s357 = smul.addr %s356, 64
          %s358 = scalar_lea.vmem [#allocation8], %s357
          %s360 = ssub.s32 1024, 1024
          %361 = vsyncadd %s355, %s360
          %s362 = smul.addr %s35, 16
          %s363 = smul.addr %s362, 64
          %s364 = scalar_lea.hbm %s2, %s363
          %s365 = sshll.u32 %s358, 4
          %s366 = int_to_ptr.vmem [resolvable:$true] %s365
          %371 = dma.hbm_to_vmem [thread:$0]  %s364, 1024, %s366, %s355, 64, 64, 4
        $region44: #{tpu_custom_call.1} parent=31 // pred_fallthru
          _
      $region32: #{tpu_custom_call.1} parent=5 // pred_fallthru
        _
      %p372 = scmp.le.s32.totalorder 1, %s28
      %p373 = scmp.lt.s32.totalorder %s28, 3
      %p374 = pnand %p372, %p373
      %p375 = pneg %p374
      // Predicated region
      $region45: #{tpu_custom_call.1} parent=5 // pred_check
        _
      $region46: #{tpu_custom_call.1} parent=5 // pred_check_branch
        %377 = sbr.rel (%p374) target = $region48
      $region47: #{tpu_custom_call.1} parent=5 // pred_region
        %s378 = ssub.s32 %s28, 1
        %s379 = sand.u32 %s55, 1
        %s380 = scalar_lea.sflag [#allocation4], %s379
        %s381 = sand.u32 %s55, 1
        %s382 = smul.addr %s381, 4
        %s383 = scalar_lea.vmem [#allocation3], %s382
        // Predicated region
        $region49: #{tpu_custom_call.1} parent=47 // pred_check
          %p384 = pneg %p68
        $region50: #{tpu_custom_call.1} parent=47 // pred_check_branch
          %386 = sbr.rel (%p384) target = $region52
        $region51: #{tpu_custom_call.1} parent=47 // pred_region
          %387 = dma.done %s380, 64
        $region52: #{tpu_custom_call.1} parent=47 // pred_fallthru
          _
        %s388 = sand.u32 %s33, 1
        %s389 = scalar_lea.sflag [#allocation7], %s388
        %s390 = sand.u32 %s81, 1
        %s391 = smul.addr %s390, 64
        %s392 = scalar_lea.vmem [#allocation6], %s391
        // Predicated region
        $region53: #{tpu_custom_call.1} parent=47 // pred_check
          %p393 = pneg %p94
        $region54: #{tpu_custom_call.1} parent=47 // pred_check_branch
          %395 = sbr.rel (%p393) target = $region56
        $region55: #{tpu_custom_call.1} parent=47 // pred_region
          %396 = dma.done %s389, 1024
        $region56: #{tpu_custom_call.1} parent=47 // pred_fallthru
          _
        %s397 = sand.u32 %s33, 1
        %s398 = scalar_lea.sflag [#allocation7], %s397
        %s399 = sand.u32 %s107, 1
        %s400 = smul.addr %s399, 64
        %s401 = scalar_lea.vmem [#allocation8], %s400
        // Predicated region
        $region57: #{tpu_custom_call.1} parent=47 // pred_check
          %p402 = pneg %p120
        $region58: #{tpu_custom_call.1} parent=47 // pred_check_branch
          %404 = sbr.rel (%p402) target = $region60
        $region59: #{tpu_custom_call.1} parent=47 // pred_region
          %405 = dma.done %s398, 1024
        $region60: #{tpu_custom_call.1} parent=47 // pred_fallthru
          _
        // Predicated region
        $region61: #{tpu_custom_call.1} parent=47 // pred_check
          %p406 = pneg %p141
        $region62: #{tpu_custom_call.1} parent=47 // pred_check_branch
          %408 = sbr.rel (%p406) target = $region64
        $region63: #{tpu_custom_call.1} parent=47 // pred_region
          %409 = dma.done [#allocation10], 1024
        $region64: #{tpu_custom_call.1} parent=47 // pred_fallthru
          _
        // Predicated region
        $region65: #{tpu_custom_call.1} parent=47 // pred_check
          %p410 = pneg %p183
        $region66: #{tpu_custom_call.1} parent=47 // pred_check_branch
          %412 = sbr.rel (%p410) target = $region68
        $region67: #{tpu_custom_call.1} parent=47 // pred_region
          %413 = dma.done [#allocation10], 1024
        $region68: #{tpu_custom_call.1} parent=47 // pred_fallthru
          _
        %s414 = sand.u32 %s55, 1
        %s415 = scalar_lea.sflag [#allocation4], %s414
        %s416 = sand.u32 %s55, 1
        %s417 = smul.addr %s416, 4
        %s418 = scalar_lea.vmem [#allocation3], %s417
        %p419 = pneg %p68
        %p420 = pneg %p65
        %s421 = sand.u32 %s33, 1
        %s422 = scalar_lea.sflag [#allocation7], %s421
        %s423 = sand.u32 %s81, 1
        %s424 = smul.addr %s423, 64
        %s425 = scalar_lea.vmem [#allocation6], %s424
        %p426 = pneg %p94
        %p427 = pneg %p91
        %s428 = sand.u32 %s33, 1
        %s429 = scalar_lea.sflag [#allocation7], %s428
        %s430 = sand.u32 %s107, 1
        %s431 = smul.addr %s430, 64
        %s432 = scalar_lea.vmem [#allocation8], %s431
        %p433 = pneg %p120
        %p434 = pneg %p117
        %p435 = pneg %p141
        %p436 = pneg %p138
        %p437 = pneg %p162
        %p438 = pneg %p159
        %p439 = pneg %p183
        %p440 = pneg %p180
        %p441 = pneg %p204
        %p442 = pneg %p201
        %p443 = pneg %p232
        %p444 = pneg %p229
        %s445 = sand.u32 %s219, 1
        %s446 = scalar_lea.sflag [#allocation5], %s445
        %s447 = sand.u32 %s219, 1
        %s448 = smul.addr %s447, 8
        %s449 = scalar_lea.vmem [#allocation12], %s448
        %p450 = pneg %p260
        %p451 = pneg %p257
        %s452 = sand.u32 %s247, 1
        %s453 = scalar_lea.sflag [#allocation14], %s452
        %s454 = sand.u32 %s247, 1
        %s455 = smul.addr %s454, 8
        %s456 = scalar_lea.vmem [#allocation13], %s455
        %p458 = scmp.eq.s32.totalorder %s38, 0
        // Predicated region
        $region69: #{tpu_custom_call.1} parent=47 // pred_check
          %p459 = pneg %p458
        $region70: #{tpu_custom_call.1} parent=47 // pred_check_branch
          %461 = sbr.rel (%p459) target = $region72
        $region71: #{tpu_custom_call.1} parent=47 // pred_region
          %v462 = vld [vmem:[%s392] sm:$0xf]
          %v463 = vld [vmem:[%s392 + $0x4] sm:$0xf]
          %v464 = vld [vmem:[%s392 + $0x8] sm:$0xf]
          %v465 = vld [vmem:[%s392 + $0xc] sm:$0xf]
          %v466 = vld [vmem:[%s392 + $0x10] sm:$0xf]
          %v467 = vld [vmem:[%s392 + $0x14] sm:$0xf]
          %v468 = vld [vmem:[%s392 + $0x18] sm:$0xf]
          %v469 = vld [vmem:[%s392 + $0x1c] sm:$0xf]
          %v470 = vld [vmem:[%s392 + $0x20] sm:$0xf]
          %v471 = vld [vmem:[%s392 + $0x24] sm:$0xf]
          %v472 = vld [vmem:[%s392 + $0x28] sm:$0xf]
          %v473 = vld [vmem:[%s392 + $0x2c] sm:$0xf]
          %v474 = vld [vmem:[%s392 + $0x30] sm:$0xf]
          %v475 = vld [vmem:[%s392 + $0x34] sm:$0xf]
          %v476 = vld [vmem:[%s392 + $0x38] sm:$0xf]
          %v477 = vld [vmem:[%s392 + $0x3c] sm:$0xf]
          %v478 = vld [vmem:[#allocation11] sm:$0xf]
          %v479 = vld [vmem:[#allocation11 + $0x4] sm:$0xf]
          %v480 = vld [vmem:[#allocation11 + $0x8] sm:$0xf]
          %v481 = vld [vmem:[#allocation11 + $0xc] sm:$0xf]
          %v482 = vld [vmem:[#allocation11 + $0x10] sm:$0xf]
          %v483 = vld [vmem:[#allocation11 + $0x14] sm:$0xf]
          %v484 = vld [vmem:[#allocation11 + $0x18] sm:$0xf]
          %v485 = vld [vmem:[#allocation11 + $0x1c] sm:$0xf]
          %v486 = vld [vmem:[#allocation11 + $0x20] sm:$0xf]
          %v487 = vld [vmem:[#allocation11 + $0x24] sm:$0xf]
          %v488 = vld [vmem:[#allocation11 + $0x28] sm:$0xf]
          %v489 = vld [vmem:[#allocation11 + $0x2c] sm:$0xf]
          %v490 = vld [vmem:[#allocation11 + $0x30] sm:$0xf]
          %v491 = vld [vmem:[#allocation11 + $0x34] sm:$0xf]
          %v492 = vld [vmem:[#allocation11 + $0x38] sm:$0xf]
          %v493 = vld [vmem:[#allocation11 + $0x3c] sm:$0xf]
          %v510 = vunpack.c.l.b16 %v462
          %v511 = vunpack.c.l.b16 %v463
          %v512 = vunpack.c.l.b16 %v464
          %v513 = vunpack.c.l.b16 %v465
          %v514 = vunpack.c.l.b16 %v466
          %v515 = vunpack.c.l.b16 %v467
          %v516 = vunpack.c.l.b16 %v468
          %v517 = vunpack.c.l.b16 %v469
          %v518 = vunpack.c.l.b16 %v470
          %v519 = vunpack.c.l.b16 %v471
          %v520 = vunpack.c.l.b16 %v472
          %v521 = vunpack.c.l.b16 %v473
          %v522 = vunpack.c.l.b16 %v474
          %v523 = vunpack.c.l.b16 %v475
          %v524 = vunpack.c.l.b16 %v476
          %v525 = vunpack.c.l.b16 %v477
          %v526 = vpack.c.b16 %v511, %v510
          %v527 = vpack.c.b16 %v513, %v512
          %v528 = vpack.c.b16 %v515, %v514
          %v529 = vpack.c.b16 %v517, %v516
          %v530 = vpack.c.b16 %v519, %v518
          %v531 = vpack.c.b16 %v521, %v520
          %v532 = vpack.c.b16 %v523, %v522
          %v533 = vpack.c.b16 %v525, %v524
          %v558 = vunpack.c.l.b16 %v478
          %v559 = vunpack.c.l.b16 %v479
          %v560 = vunpack.c.l.b16 %v480
          %v561 = vunpack.c.l.b16 %v481
          %v562 = vunpack.c.l.b16 %v482
          %v563 = vunpack.c.l.b16 %v483
          %v564 = vunpack.c.l.b16 %v484
          %v565 = vunpack.c.l.b16 %v485
          %v566 = vunpack.c.l.b16 %v486
          %v567 = vunpack.c.l.b16 %v487
          %v568 = vunpack.c.l.b16 %v488
          %v569 = vunpack.c.l.b16 %v489
          %v570 = vunpack.c.l.b16 %v490
          %v571 = vunpack.c.l.b16 %v491
          %v572 = vunpack.c.l.b16 %v492
          %v573 = vunpack.c.l.b16 %v493
          %v574 = vpack.c.b16 %v559, %v558
          %v575 = vpack.c.b16 %v561, %v560
          %v576 = vpack.c.b16 %v563, %v562
          %v577 = vpack.c.b16 %v565, %v564
          %v578 = vpack.c.b16 %v567, %v566
          %v579 = vpack.c.b16 %v569, %v568
          %v580 = vpack.c.b16 %v571, %v570
          %v581 = vpack.c.b16 %v573, %v572
          %590 = vmatprep.subr.bf16.mxu0 0
          %591 = vmatpush1.bf16.msra.mxu0 %v574
          %592 = vmatprep.subr.bf16.mxu0 0
          %593 = vmatpush1.bf16.msra.mxu0 %v575
          %594 = vmatprep.subr.bf16.mxu0 0
          %595 = vmatpush1.bf16.msra.mxu0 %v576
          %596 = vmatprep.subr.bf16.mxu0 0
          %597 = vmatpush1.bf16.msra.mxu0 %v577
          %598 = vmatprep.subr.bf16.mxu0 0
          %599 = vmatpush1.bf16.msra.mxu0 %v578
          %600 = vmatprep.subr.bf16.mxu0 0
          %601 = vmatpush1.bf16.msra.mxu0 %v579
          %602 = vmatprep.subr.bf16.mxu0 0
          %603 = vmatpush1.bf16.msra.mxu0 %v580
          %604 = vmatprep.subr.bf16.mxu0 0
          %605 = vmatpush1.bf16.msra.mxu0 %v581
          %606 = vmatprep.subr.bf16.mxu0 0
          %607 = vmatpush1.bf16.msra.mxu0 0
          %608 = vmatprep.subr.bf16.mxu0 0
          %609 = vmatpush1.bf16.msra.mxu0 0
          %610 = vmatprep.subr.bf16.mxu0 0
          %611 = vmatpush1.bf16.msra.mxu0 0
          %612 = vmatprep.subr.bf16.mxu0 0
          %613 = vmatpush1.bf16.msra.mxu0 0
          %614 = vmatprep.subr.bf16.mxu0 0
          %615 = vmatpush1.bf16.msra.mxu0 0
          %616 = vmatprep.subr.bf16.mxu0 0
          %617 = vmatpush1.bf16.msra.mxu0 0
          %618 = vmatprep.subr.bf16.mxu0 0
          %619 = vmatpush1.bf16.msra.mxu0 0
          %620 = vmatprep.subr.bf16.mxu0 0
          %621 = vmatpush1.bf16.msra.mxu0 0
          %622 = vmatprep.mubr.bf16.mxu0 0
          %623 = vmatmul.mubr.bf16.gmra.mrb[0].mxu0 %v526
          %v624 = vpop.f32.mrb[0].mxu0
          %v625 = vadd.f32 0.0, %v624
          %v626 = vpop.f32.mrb[0].mxu0
          %v627 = vpop.f32.mrb[0].mxu0
          %v628 = vadd.f32 0.0, %v627
          %v629 = vpop.f32.mrb[0].mxu0
          %630 = vmatprep.mubr.bf16.mxu0 0
          %631 = vmatmul.mubr.bf16.gmra.mrb[0].mxu0 %v527
          %v632 = vpop.f32.mrb[0].mxu0
          %v633 = vadd.f32 0.0, %v632
          %v634 = vpop.f32.mrb[0].mxu0
          %v635 = vpop.f32.mrb[0].mxu0
          %v636 = vadd.f32 0.0, %v635
          %v637 = vpop.f32.mrb[0].mxu0
          %638 = vmatprep.mubr.bf16.mxu0 0
          %639 = vmatmul.mubr.bf16.gmra.mrb[0].mxu0 %v528
          %v640 = vpop.f32.mrb[0].mxu0
          %v641 = vadd.f32 0.0, %v640
          %v642 = vpop.f32.mrb[0].mxu0
          %v643 = vpop.f32.mrb[0].mxu0
          %v644 = vadd.f32 0.0, %v643
          %v645 = vpop.f32.mrb[0].mxu0
          %646 = vmatprep.mubr.bf16.mxu0 0
          %647 = vmatmul.mubr.bf16.gmra.mrb[0].mxu0 %v529
          %v648 = vpop.f32.mrb[0].mxu0
          %v649 = vadd.f32 0.0, %v648
          %v650 = vpop.f32.mrb[0].mxu0
          %v651 = vpop.f32.mrb[0].mxu0
          %v652 = vadd.f32 0.0, %v651
          %v653 = vpop.f32.mrb[0].mxu0
          %654 = vmatprep.mubr.bf16.mxu0 0
          %655 = vmatmul.mubr.bf16.gmra.mrb[0].mxu0 %v530
          %v656 = vpop.f32.mrb[0].mxu0
          %v657 = vadd.f32 0.0, %v656
          %v658 = vpop.f32.mrb[0].mxu0
          %v659 = vpop.f32.mrb[0].mxu0
          %v660 = vadd.f32 0.0, %v659
          %v661 = vpop.f32.mrb[0].mxu0
          %662 = vmatprep.mubr.bf16.mxu0 0
          %663 = vmatmul.mubr.bf16.gmra.mrb[0].mxu0 %v531
          %v664 = vpop.f32.mrb[0].mxu0
          %v665 = vadd.f32 0.0, %v664
          %v666 = vpop.f32.mrb[0].mxu0
          %v667 = vpop.f32.mrb[0].mxu0
          %v668 = vadd.f32 0.0, %v667
          %v669 = vpop.f32.mrb[0].mxu0
          %670 = vmatprep.mubr.bf16.mxu0 0
          %671 = vmatmul.mubr.bf16.gmra.mrb[0].mxu0 %v532
          %v672 = vpop.f32.mrb[0].mxu0
          %v673 = vadd.f32 0.0, %v672
          %v674 = vpop.f32.mrb[0].mxu0
          %v675 = vpop.f32.mrb[0].mxu0
          %v676 = vadd.f32 0.0, %v675
          %v677 = vpop.f32.mrb[0].mxu0
          %678 = vmatprep.mubr.bf16.mxu0 0
          %679 = vmatmul.mubr.bf16.gmra.mrb[0].mxu0 %v533
          %v680 = vpop.f32.mrb[0].mxu0
          %v681 = vadd.f32 0.0, %v680
          %v682 = vpop.f32.mrb[0].mxu0
          %v683 = vpop.f32.mrb[0].mxu0
          %v684 = vadd.f32 0.0, %v683
          %v685 = vpop.f32.mrb[0].mxu0
          %686 = vdwg.mxu0
          %v687 = vpack.c.bf16 %v628, %v625
          %v688 = vpack.c.bf16 %v636, %v633
          %v689 = vpack.c.bf16 %v644, %v641
          %v690 = vpack.c.bf16 %v652, %v649
          %v691 = vpack.c.bf16 %v660, %v657
          %v692 = vpack.c.bf16 %v668, %v665
          %v693 = vpack.c.bf16 %v676, %v673
          %v694 = vpack.c.bf16 %v684, %v681
          %695 = vst [vmem:[#allocation2] sm:$0xff] %v687
          %696 = vst [vmem:[#allocation2 + $0x8] sm:$0xff] %v688
          %697 = vst [vmem:[#allocation2 + $0x10] sm:$0xff] %v689
          %698 = vst [vmem:[#allocation2 + $0x18] sm:$0xff] %v690
          %699 = vst [vmem:[#allocation2 + $0x20] sm:$0xff] %v691
          %700 = vst [vmem:[#allocation2 + $0x28] sm:$0xff] %v692
          %701 = vst [vmem:[#allocation2 + $0x30] sm:$0xff] %v693
          %702 = vst [vmem:[#allocation2 + $0x38] sm:$0xff] %v694
        $region72: #{tpu_custom_call.1} parent=47 // pred_fallthru
          _
        %v703 = vld [vmem:[%s383] sm:$0xf]
        %v704 = vld [vmem:[#allocation9] sm:$0xf]
        %v705 = vld [vmem:[#allocation9 + $0x4] sm:$0xf]
        %v706 = vld [vmem:[#allocation9 + $0x8] sm:$0xf]
        %v707 = vld [vmem:[#allocation9 + $0xc] sm:$0xf]
        %v708 = vld [vmem:[#allocation9 + $0x10] sm:$0xf]
        %v709 = vld [vmem:[#allocation9 + $0x14] sm:$0xf]
        %v710 = vld [vmem:[#allocation9 + $0x18] sm:$0xf]
        %v711 = vld [vmem:[#allocation9 + $0x1c] sm:$0xf]
        %v712 = vld [vmem:[#allocation9 + $0x20] sm:$0xf]
        %v713 = vld [vmem:[#allocation9 + $0x24] sm:$0xf]
        %v714 = vld [vmem:[#allocation9 + $0x28] sm:$0xf]
        %v715 = vld [vmem:[#allocation9 + $0x2c] sm:$0xf]
        %v716 = vld [vmem:[#allocation9 + $0x30] sm:$0xf]
        %v717 = vld [vmem:[#allocation9 + $0x34] sm:$0xf]
        %v718 = vld [vmem:[#allocation9 + $0x38] sm:$0xf]
        %v719 = vld [vmem:[#allocation9 + $0x3c] sm:$0xf]
        %v720 = vld [vmem:[%s4] sm:$0x1]
        %v722 = vlaneseq
        %v723 = vshrl.u32 %v722, 7
        %v724 = vsub.s32 0, %v723
        %v725 = vrot.slane %v720, %v724
        %v743 = vunpack.c.l.b16 %v704
        %v744 = vunpack.c.l.b16 %v705
        %v745 = vunpack.c.l.b16 %v706
        %v746 = vunpack.c.l.b16 %v707
        %v747 = vunpack.c.l.b16 %v708
        %v748 = vunpack.c.l.b16 %v709
        %v749 = vunpack.c.l.b16 %v710
        %v750 = vunpack.c.l.b16 %v711
        %v751 = vunpack.c.l.b16 %v712
        %v752 = vunpack.c.l.b16 %v713
        %v753 = vunpack.c.l.b16 %v714
        %v754 = vunpack.c.l.b16 %v715
        %v755 = vunpack.c.l.b16 %v716
        %v756 = vunpack.c.l.b16 %v717
        %v757 = vunpack.c.l.b16 %v718
        %v758 = vunpack.c.l.b16 %v719
        %v759 = vpack.c.b16 %v744, %v743
        %v760 = vpack.c.b16 %v746, %v745
        %v761 = vpack.c.b16 %v748, %v747
        %v762 = vpack.c.b16 %v750, %v749
        %v763 = vpack.c.b16 %v752, %v751
        %v764 = vpack.c.b16 %v754, %v753
        %v765 = vpack.c.b16 %v756, %v755
        %v766 = vpack.c.b16 %v758, %v757
        %775 = vmatprep.subr.bf16.mxu0 0
        %776 = vmatpush1.bf16.msra.mxu0 %v759
        %777 = vmatprep.subr.bf16.mxu0 0
        %778 = vmatpush1.bf16.msra.mxu0 %v760
        %779 = vmatprep.subr.bf16.mxu0 0
        %780 = vmatpush1.bf16.msra.mxu0 %v761
        %781 = vmatprep.subr.bf16.mxu0 0
        %782 = vmatpush1.bf16.msra.mxu0 %v762
        %783 = vmatprep.subr.bf16.mxu0 0
        %784 = vmatpush1.bf16.msra.mxu0 %v763
        %785 = vmatprep.subr.bf16.mxu0 0
        %786 = vmatpush1.bf16.msra.mxu0 %v764
        %787 = vmatprep.subr.bf16.mxu0 0
        %788 = vmatpush1.bf16.msra.mxu0 %v765
        %789 = vmatprep.subr.bf16.mxu0 0
        %790 = vmatpush1.bf16.msra.mxu0 %v766
        %791 = vmatprep.subr.bf16.mxu0 0
        %792 = vmatpush1.bf16.msra.mxu0 0
        %793 = vmatprep.subr.bf16.mxu0 0
        %794 = vmatpush1.bf16.msra.mxu0 0
        %795 = vmatprep.subr.bf16.mxu0 0
        %796 = vmatpush1.bf16.msra.mxu0 0
        %797 = vmatprep.subr.bf16.mxu0 0
        %798 = vmatpush1.bf16.msra.mxu0 0
        %799 = vmatprep.subr.bf16.mxu0 0
        %800 = vmatpush1.bf16.msra.mxu0 0
        %801 = vmatprep.subr.bf16.mxu0 0
        %802 = vmatpush1.bf16.msra.mxu0 0
        %803 = vmatprep.subr.bf16.mxu0 0
        %804 = vmatpush1.bf16.msra.mxu0 0
        %805 = vmatprep.subr.bf16.mxu0 0
        %806 = vmatpush1.bf16.msra.mxu0 0
        %807 = vmatprep.mubr.bf16.mxu0 0
        %808 = vmatmul.mubr.bf16.gmra.mrb[0].mxu0 %v703
        %v809 = vpop.f32.mrb[0].mxu0
        %v810 = vadd.f32 %v725, %v809
        %v811 = vpop.f32.mrb[0].mxu0
        %v812 = vpop.f32.mrb[0].mxu0
        %v813 = vpop.f32.mrb[0].mxu0
        %814 = vdwg.mxu0
        %v815 = vpack.c.bf16 %v810, %v810
        %v816 = vld [vmem:[#allocation2] sm:$0xff]
        %v817 = vld [vmem:[#allocation2 + $0x8] sm:$0xff]
        %v818 = vld [vmem:[#allocation2 + $0x10] sm:$0xff]
        %v819 = vld [vmem:[#allocation2 + $0x18] sm:$0xff]
        %v820 = vld [vmem:[#allocation2 + $0x20] sm:$0xff]
        %v821 = vld [vmem:[#allocation2 + $0x28] sm:$0xff]
        %v822 = vld [vmem:[#allocation2 + $0x30] sm:$0xff]
        %v823 = vld [vmem:[#allocation2 + $0x38] sm:$0xff]
        %v826 = vunpack.c.l.s4 1966171168
        %v827 = vunpack.c.0.s8 %v826
        %v828 = vlaneseq
        %v829 = vshrl.u32 %v828, 7
        %v830 = vsub.s32 %v827, %v829
        %v831 = vrot.slane %v815, %v830
        %v832 = vcombine.high %v831, %v831
        %v834 = vunpack.c.l.s4 1966171168
        %v835 = vunpack.c.0.s8 %v834
        %v836 = vlaneseq
        %v837 = vshrl.u32 %v836, 7
        %v838 = vsub.s32 %v835, %v837
        %v839 = vrot.slane %v831, %v838
        %v841 = vunpack.c.l.s4 1966171168
        %v842 = vunpack.c.0.s8 %v841
        %v843 = vlaneseq
        %v844 = vshrl.u32 %v843, 7
        %v845 = vsub.s32 %v842, %v844
        %v846 = vrot.slane %v832, %v845
        %v847 = vcombine.high %v839, %v839
        %v848 = vcombine.high %v846, %v846
        %v849 = vunpack.i.l.s16 %v839
        %v850 = vunpack.i.h.s16 %v839
        %v851 = vunpack.i.l.s16 %v846
        %v852 = vunpack.i.h.s16 %v846
        %v853 = vunpack.i.l.s16 %v847
        %v854 = vunpack.i.h.s16 %v847
        %v855 = vunpack.i.l.s16 %v848
        %v856 = vunpack.i.h.s16 %v848
        %v857 = vpack.i.b16 %v849, %v849
        %v858 = vpack.i.b16 %v850, %v850
        %v859 = vpack.i.b16 %v851, %v851
        %v860 = vpack.i.b16 %v852, %v852
        %v861 = vpack.i.b16 %v853, %v853
        %v862 = vpack.i.b16 %v854, %v854
        %v863 = vpack.i.b16 %v855, %v855
        %v864 = vpack.i.b16 %v856, %v856
        %v865 = vlaneseq
        %v866 = vshrl.u32 %v865, 7
        %v867 = vsub.s32 0, %v866
        %v868 = vrot.slane %v857, %v867
        %v869 = vlaneseq
        %v870 = vshrl.u32 %v869, 7
        %v871 = vsub.s32 0, %v870
        %v872 = vrot.slane %v858, %v871
        %v873 = vlaneseq
        %v874 = vshrl.u32 %v873, 7
        %v875 = vsub.s32 0, %v874
        %v876 = vrot.slane %v859, %v875
        %v877 = vlaneseq
        %v878 = vshrl.u32 %v877, 7
        %v879 = vsub.s32 0, %v878
        %v880 = vrot.slane %v860, %v879
        %v881 = vlaneseq
        %v882 = vshrl.u32 %v881, 7
        %v883 = vsub.s32 0, %v882
        %v884 = vrot.slane %v861, %v883
        %v885 = vlaneseq
        %v886 = vshrl.u32 %v885, 7
        %v887 = vsub.s32 0, %v886
        %v888 = vrot.slane %v862, %v887
        %v889 = vlaneseq
        %v890 = vshrl.u32 %v889, 7
        %v891 = vsub.s32 0, %v890
        %v892 = vrot.slane %v863, %v891
        %v893 = vlaneseq
        %v894 = vshrl.u32 %v893, 7
        %v895 = vsub.s32 0, %v894
        %v896 = vrot.slane %v864, %v895
        %v898 = vpack.i.b16 %v868, %v868
        %v900 = vlaneseq
        %v901 = vshrl.u32 %v900, 7
        %v902 = vsub.s32 0, %v901
        %v903 = vrot.slane %v898, %v902
        %v905 = vpack.i.b16 %v872, %v872
        %v907 = vlaneseq
        %v908 = vshrl.u32 %v907, 7
        %v909 = vsub.s32 0, %v908
        %v910 = vrot.slane %v905, %v909
        %v912 = vpack.i.b16 %v876, %v876
        %v914 = vlaneseq
        %v915 = vshrl.u32 %v914, 7
        %v916 = vsub.s32 0, %v915
        %v917 = vrot.slane %v912, %v916
        %v919 = vpack.i.b16 %v880, %v880
        %v921 = vlaneseq
        %v922 = vshrl.u32 %v921, 7
        %v923 = vsub.s32 0, %v922
        %v924 = vrot.slane %v919, %v923
        %v926 = vpack.i.b16 %v884, %v884
        %v928 = vlaneseq
        %v929 = vshrl.u32 %v928, 7
        %v930 = vsub.s32 0, %v929
        %v931 = vrot.slane %v926, %v930
        %v933 = vpack.i.b16 %v888, %v888
        %v935 = vlaneseq
        %v936 = vshrl.u32 %v935, 7
        %v937 = vsub.s32 0, %v936
        %v938 = vrot.slane %v933, %v937
        %v940 = vpack.i.b16 %v892, %v892
        %v942 = vlaneseq
        %v943 = vshrl.u32 %v942, 7
        %v944 = vsub.s32 0, %v943
        %v945 = vrot.slane %v940, %v944
        %v947 = vpack.i.b16 %v896, %v896
        %v949 = vlaneseq
        %v950 = vshrl.u32 %v949, 7
        %v951 = vsub.s32 0, %v950
        %v952 = vrot.slane %v947, %v951
        %v953 = vadd.bf16 %v903, %v816
        %v954 = vadd.bf16 %v903, %v817
        %v955 = vadd.bf16 %v903, %v818
        %v956 = vadd.bf16 %v903, %v819
        %v957 = vadd.bf16 %v903, %v820
        %v958 = vadd.bf16 %v903, %v821
        %v959 = vadd.bf16 %v903, %v822
        %v960 = vadd.bf16 %v903, %v823
        %v961 = vadd.bf16 %v910, %v816
        %v962 = vadd.bf16 %v910, %v817
        %v963 = vadd.bf16 %v910, %v818
        %v964 = vadd.bf16 %v910, %v819
        %v965 = vadd.bf16 %v910, %v820
        %v966 = vadd.bf16 %v910, %v821
        %v967 = vadd.bf16 %v910, %v822
        %v968 = vadd.bf16 %v910, %v823
        %v969 = vadd.bf16 %v917, %v816
        %v970 = vadd.bf16 %v917, %v817
        %v971 = vadd.bf16 %v917, %v818
        %v972 = vadd.bf16 %v917, %v819
        %v973 = vadd.bf16 %v917, %v820
        %v974 = vadd.bf16 %v917, %v821
        %v975 = vadd.bf16 %v917, %v822
        %v976 = vadd.bf16 %v917, %v823
        %v977 = vadd.bf16 %v924, %v816
        %v978 = vadd.bf16 %v924, %v817
        %v979 = vadd.bf16 %v924, %v818
        %v980 = vadd.bf16 %v924, %v819
        %v981 = vadd.bf16 %v924, %v820
        %v982 = vadd.bf16 %v924, %v821
        %v983 = vadd.bf16 %v924, %v822
        %v984 = vadd.bf16 %v924, %v823
        %v985 = vadd.bf16 %v931, %v816
        %v986 = vadd.bf16 %v931, %v817
        %v987 = vadd.bf16 %v931, %v818
        %v988 = vadd.bf16 %v931, %v819
        %v989 = vadd.bf16 %v931, %v820
        %v990 = vadd.bf16 %v931, %v821
        %v991 = vadd.bf16 %v931, %v822
        %v992 = vadd.bf16 %v931, %v823
        %v993 = vadd.bf16 %v938, %v816
        %v994 = vadd.bf16 %v938, %v817
        %v995 = vadd.bf16 %v938, %v818
        %v996 = vadd.bf16 %v938, %v819
        %v997 = vadd.bf16 %v938, %v820
        %v998 = vadd.bf16 %v938, %v821
        %v999 = vadd.bf16 %v938, %v822
        %v1000 = vadd.bf16 %v938, %v823
        %v1001 = vadd.bf16 %v945, %v816
        %v1002 = vadd.bf16 %v945, %v817
        %v1003 = vadd.bf16 %v945, %v818
        %v1004 = vadd.bf16 %v945, %v819
        %v1005 = vadd.bf16 %v945, %v820
        %v1006 = vadd.bf16 %v945, %v821
        %v1007 = vadd.bf16 %v945, %v822
        %v1008 = vadd.bf16 %v945, %v823
        %v1009 = vadd.bf16 %v952, %v816
        %v1010 = vadd.bf16 %v952, %v817
        %v1011 = vadd.bf16 %v952, %v818
        %v1012 = vadd.bf16 %v952, %v819
        %v1013 = vadd.bf16 %v952, %v820
        %v1014 = vadd.bf16 %v952, %v821
        %v1015 = vadd.bf16 %v952, %v822
        %v1016 = vadd.bf16 %v952, %v823
        %v1017 = vtanh.bf16.pop %v953
        %v1018 = vtanh.bf16.pop %v954
        %v1019 = vtanh.bf16.pop %v955
        %v1020 = vtanh.bf16.pop %v956
        %v1021 = vtanh.bf16.pop %v957
        %v1022 = vtanh.bf16.pop %v958
        %v1023 = vtanh.bf16.pop %v959
        %v1024 = vtanh.bf16.pop %v960
        %v1025 = vtanh.bf16.pop %v961
        %v1026 = vtanh.bf16.pop %v962
        %v1027 = vtanh.bf16.pop %v963
        %v1028 = vtanh.bf16.pop %v964
        %v1029 = vtanh.bf16.pop %v965
        %v1030 = vtanh.bf16.pop %v966
        %v1031 = vtanh.bf16.pop %v967
        %v1032 = vtanh.bf16.pop %v968
        %v1033 = vtanh.bf16.pop %v969
        %v1034 = vtanh.bf16.pop %v970
        %v1035 = vtanh.bf16.pop %v971
        %v1036 = vtanh.bf16.pop %v972
        %v1037 = vtanh.bf16.pop %v973
        %v1038 = vtanh.bf16.pop %v974
        %v1039 = vtanh.bf16.pop %v975
        %v1040 = vtanh.bf16.pop %v976
        %v1041 = vtanh.bf16.pop %v977
        %v1042 = vtanh.bf16.pop %v978
        %v1043 = vtanh.bf16.pop %v979
        %v1044 = vtanh.bf16.pop %v980
        %v1045 = vtanh.bf16.pop %v981
        %v1046 = vtanh.bf16.pop %v982
        %v1047 = vtanh.bf16.pop %v983
        %v1048 = vtanh.bf16.pop %v984
        %v1049 = vtanh.bf16.pop %v985
        %v1050 = vtanh.bf16.pop %v986
        %v1051 = vtanh.bf16.pop %v987
        %v1052 = vtanh.bf16.pop %v988
        %v1053 = vtanh.bf16.pop %v989
        %v1054 = vtanh.bf16.pop %v990
        %v1055 = vtanh.bf16.pop %v991
        %v1056 = vtanh.bf16.pop %v992
        %v1057 = vtanh.bf16.pop %v993
        %v1058 = vtanh.bf16.pop %v994
        %v1059 = vtanh.bf16.pop %v995
        %v1060 = vtanh.bf16.pop %v996
        %v1061 = vtanh.bf16.pop %v997
        %v1062 = vtanh.bf16.pop %v998
        %v1063 = vtanh.bf16.pop %v999
        %v1064 = vtanh.bf16.pop %v1000
        %v1065 = vtanh.bf16.pop %v1001
        %v1066 = vtanh.bf16.pop %v1002
        %v1067 = vtanh.bf16.pop %v1003
        %v1068 = vtanh.bf16.pop %v1004
        %v1069 = vtanh.bf16.pop %v1005
        %v1070 = vtanh.bf16.pop %v1006
        %v1071 = vtanh.bf16.pop %v1007
        %v1072 = vtanh.bf16.pop %v1008
        %v1073 = vtanh.bf16.pop %v1009
        %v1074 = vtanh.bf16.pop %v1010
        %v1075 = vtanh.bf16.pop %v1011
        %v1076 = vtanh.bf16.pop %v1012
        %v1077 = vtanh.bf16.pop %v1013
        %v1078 = vtanh.bf16.pop %v1014
        %v1079 = vtanh.bf16.pop %v1015
        %v1080 = vtanh.bf16.pop %v1016
        %v1081 = vld [vmem:[%s6] sm:$0x1]
        %v1083 = vpack.i.b16 %v1081, %v1081
        %v1085 = vlaneseq
        %v1086 = vshrl.u32 %v1085, 7
        %v1087 = vsub.s32 0, %v1086
        %v1088 = vrot.slane %v1083, %v1087
        %v1089 = vmul.bf16 %v1017, %v1088
        %v1090 = vmul.bf16 %v1018, %v1088
        %v1091 = vmul.bf16 %v1019, %v1088
        %v1092 = vmul.bf16 %v1020, %v1088
        %v1093 = vmul.bf16 %v1021, %v1088
        %v1094 = vmul.bf16 %v1022, %v1088
        %v1095 = vmul.bf16 %v1023, %v1088
        %v1096 = vmul.bf16 %v1024, %v1088
        %v1097 = vmul.bf16 %v1025, %v1088
        %v1098 = vmul.bf16 %v1026, %v1088
        %v1099 = vmul.bf16 %v1027, %v1088
        %v1100 = vmul.bf16 %v1028, %v1088
        %v1101 = vmul.bf16 %v1029, %v1088
        %v1102 = vmul.bf16 %v1030, %v1088
        %v1103 = vmul.bf16 %v1031, %v1088
        %v1104 = vmul.bf16 %v1032, %v1088
        %v1105 = vmul.bf16 %v1033, %v1088
        %v1106 = vmul.bf16 %v1034, %v1088
        %v1107 = vmul.bf16 %v1035, %v1088
        %v1108 = vmul.bf16 %v1036, %v1088
        %v1109 = vmul.bf16 %v1037, %v1088
        %v1110 = vmul.bf16 %v1038, %v1088
        %v1111 = vmul.bf16 %v1039, %v1088
        %v1112 = vmul.bf16 %v1040, %v1088
        %v1113 = vmul.bf16 %v1041, %v1088
        %v1114 = vmul.bf16 %v1042, %v1088
        %v1115 = vmul.bf16 %v1043, %v1088
        %v1116 = vmul.bf16 %v1044, %v1088
        %v1117 = vmul.bf16 %v1045, %v1088
        %v1118 = vmul.bf16 %v1046, %v1088
        %v1119 = vmul.bf16 %v1047, %v1088
        %v1120 = vmul.bf16 %v1048, %v1088
        %v1121 = vmul.bf16 %v1049, %v1088
        %v1122 = vmul.bf16 %v1050, %v1088
        %v1123 = vmul.bf16 %v1051, %v1088
        %v1124 = vmul.bf16 %v1052, %v1088
        %v1125 = vmul.bf16 %v1053, %v1088
        %v1126 = vmul.bf16 %v1054, %v1088
        %v1127 = vmul.bf16 %v1055, %v1088
        %v1128 = vmul.bf16 %v1056, %v1088
        %v1129 = vmul.bf16 %v1057, %v1088
        %v1130 = vmul.bf16 %v1058, %v1088
        %v1131 = vmul.bf16 %v1059, %v1088
        %v1132 = vmul.bf16 %v1060, %v1088
        %v1133 = vmul.bf16 %v1061, %v1088
        %v1134 = vmul.bf16 %v1062, %v1088
        %v1135 = vmul.bf16 %v1063, %v1088
        %v1136 = vmul.bf16 %v1064, %v1088
        %v1137 = vmul.bf16 %v1065, %v1088
        %v1138 = vmul.bf16 %v1066, %v1088
        %v1139 = vmul.bf16 %v1067, %v1088
        %v1140 = vmul.bf16 %v1068, %v1088
        %v1141 = vmul.bf16 %v1069, %v1088
        %v1142 = vmul.bf16 %v1070, %v1088
        %v1143 = vmul.bf16 %v1071, %v1088
        %v1144 = vmul.bf16 %v1072, %v1088
        %v1145 = vmul.bf16 %v1073, %v1088
        %v1146 = vmul.bf16 %v1074, %v1088
        %v1147 = vmul.bf16 %v1075, %v1088
        %v1148 = vmul.bf16 %v1076, %v1088
        %v1149 = vmul.bf16 %v1077, %v1088
        %v1150 = vmul.bf16 %v1078, %v1088
        %v1151 = vmul.bf16 %v1079, %v1088
        %v1152 = vmul.bf16 %v1080, %v1088
        %v1153 = vunpack.c.l.bf16 %v1089
        %v1154 = vunpack.c.h.bf16 %v1089
        %v1155 = vunpack.c.l.bf16 %v1090
        %v1156 = vunpack.c.h.bf16 %v1090
        %v1157 = vunpack.c.l.bf16 %v1091
        %v1158 = vunpack.c.h.bf16 %v1091
        %v1159 = vunpack.c.l.bf16 %v1092
        %v1160 = vunpack.c.h.bf16 %v1092
        %v1161 = vunpack.c.l.bf16 %v1093
        %v1162 = vunpack.c.h.bf16 %v1093
        %v1163 = vunpack.c.l.bf16 %v1094
        %v1164 = vunpack.c.h.bf16 %v1094
        %v1165 = vunpack.c.l.bf16 %v1095
        %v1166 = vunpack.c.h.bf16 %v1095
        %v1167 = vunpack.c.l.bf16 %v1096
        %v1168 = vunpack.c.h.bf16 %v1096
        %v1169 = vunpack.c.l.bf16 %v1097
        %v1170 = vunpack.c.h.bf16 %v1097
        %v1171 = vunpack.c.l.bf16 %v1098
        %v1172 = vunpack.c.h.bf16 %v1098
        %v1173 = vunpack.c.l.bf16 %v1099
        %v1174 = vunpack.c.h.bf16 %v1099
        %v1175 = vunpack.c.l.bf16 %v1100
        %v1176 = vunpack.c.h.bf16 %v1100
        %v1177 = vunpack.c.l.bf16 %v1101
        %v1178 = vunpack.c.h.bf16 %v1101
        %v1179 = vunpack.c.l.bf16 %v1102
        %v1180 = vunpack.c.h.bf16 %v1102
        %v1181 = vunpack.c.l.bf16 %v1103
        %v1182 = vunpack.c.h.bf16 %v1103
        %v1183 = vunpack.c.l.bf16 %v1104
        %v1184 = vunpack.c.h.bf16 %v1104
        %v1185 = vunpack.c.l.bf16 %v1105
        %v1186 = vunpack.c.h.bf16 %v1105
        %v1187 = vunpack.c.l.bf16 %v1106
        %v1188 = vunpack.c.h.bf16 %v1106
        %v1189 = vunpack.c.l.bf16 %v1107
        %v1190 = vunpack.c.h.bf16 %v1107
        %v1191 = vunpack.c.l.bf16 %v1108
        %v1192 = vunpack.c.h.bf16 %v1108
        %v1193 = vunpack.c.l.bf16 %v1109
        %v1194 = vunpack.c.h.bf16 %v1109
        %v1195 = vunpack.c.l.bf16 %v1110
        %v1196 = vunpack.c.h.bf16 %v1110
        %v1197 = vunpack.c.l.bf16 %v1111
        %v1198 = vunpack.c.h.bf16 %v1111
        %v1199 = vunpack.c.l.bf16 %v1112
        %v1200 = vunpack.c.h.bf16 %v1112
        %v1201 = vunpack.c.l.bf16 %v1113
        %v1202 = vunpack.c.h.bf16 %v1113
        %v1203 = vunpack.c.l.bf16 %v1114
        %v1204 = vunpack.c.h.bf16 %v1114
        %v1205 = vunpack.c.l.bf16 %v1115
        %v1206 = vunpack.c.h.bf16 %v1115
        %v1207 = vunpack.c.l.bf16 %v1116
        %v1208 = vunpack.c.h.bf16 %v1116
        %v1209 = vunpack.c.l.bf16 %v1117
        %v1210 = vunpack.c.h.bf16 %v1117
        %v1211 = vunpack.c.l.bf16 %v1118
        %v1212 = vunpack.c.h.bf16 %v1118
        %v1213 = vunpack.c.l.bf16 %v1119
        %v1214 = vunpack.c.h.bf16 %v1119
        %v1215 = vunpack.c.l.bf16 %v1120
        %v1216 = vunpack.c.h.bf16 %v1120
        %v1217 = vunpack.c.l.bf16 %v1121
        %v1218 = vunpack.c.h.bf16 %v1121
        %v1219 = vunpack.c.l.bf16 %v1122
        %v1220 = vunpack.c.h.bf16 %v1122
        %v1221 = vunpack.c.l.bf16 %v1123
        %v1222 = vunpack.c.h.bf16 %v1123
        %v1223 = vunpack.c.l.bf16 %v1124
        %v1224 = vunpack.c.h.bf16 %v1124
        %v1225 = vunpack.c.l.bf16 %v1125
        %v1226 = vunpack.c.h.bf16 %v1125
        %v1227 = vunpack.c.l.bf16 %v1126
        %v1228 = vunpack.c.h.bf16 %v1126
        %v1229 = vunpack.c.l.bf16 %v1127
        %v1230 = vunpack.c.h.bf16 %v1127
        %v1231 = vunpack.c.l.bf16 %v1128
        %v1232 = vunpack.c.h.bf16 %v1128
        %v1233 = vunpack.c.l.bf16 %v1129
        %v1234 = vunpack.c.h.bf16 %v1129
        %v1235 = vunpack.c.l.bf16 %v1130
        %v1236 = vunpack.c.h.bf16 %v1130
        %v1237 = vunpack.c.l.bf16 %v1131
        %v1238 = vunpack.c.h.bf16 %v1131
        %v1239 = vunpack.c.l.bf16 %v1132
        %v1240 = vunpack.c.h.bf16 %v1132
        %v1241 = vunpack.c.l.bf16 %v1133
        %v1242 = vunpack.c.h.bf16 %v1133
        %v1243 = vunpack.c.l.bf16 %v1134
        %v1244 = vunpack.c.h.bf16 %v1134
        %v1245 = vunpack.c.l.bf16 %v1135
        %v1246 = vunpack.c.h.bf16 %v1135
        %v1247 = vunpack.c.l.bf16 %v1136
        %v1248 = vunpack.c.h.bf16 %v1136
        %v1249 = vunpack.c.l.bf16 %v1137
        %v1250 = vunpack.c.h.bf16 %v1137
        %v1251 = vunpack.c.l.bf16 %v1138
        %v1252 = vunpack.c.h.bf16 %v1138
        %v1253 = vunpack.c.l.bf16 %v1139
        %v1254 = vunpack.c.h.bf16 %v1139
        %v1255 = vunpack.c.l.bf16 %v1140
        %v1256 = vunpack.c.h.bf16 %v1140
        %v1257 = vunpack.c.l.bf16 %v1141
        %v1258 = vunpack.c.h.bf16 %v1141
        %v1259 = vunpack.c.l.bf16 %v1142
        %v1260 = vunpack.c.h.bf16 %v1142
        %v1261 = vunpack.c.l.bf16 %v1143
        %v1262 = vunpack.c.h.bf16 %v1143
        %v1263 = vunpack.c.l.bf16 %v1144
        %v1264 = vunpack.c.h.bf16 %v1144
        %v1265 = vunpack.c.l.bf16 %v1145
        %v1266 = vunpack.c.h.bf16 %v1145
        %v1267 = vunpack.c.l.bf16 %v1146
        %v1268 = vunpack.c.h.bf16 %v1146
        %v1269 = vunpack.c.l.bf16 %v1147
        %v1270 = vunpack.c.h.bf16 %v1147
        %v1271 = vunpack.c.l.bf16 %v1148
        %v1272 = vunpack.c.h.bf16 %v1148
        %v1273 = vunpack.c.l.bf16 %v1149
        %v1274 = vunpack.c.h.bf16 %v1149
        %v1275 = vunpack.c.l.bf16 %v1150
        %v1276 = vunpack.c.h.bf16 %v1150
        %v1277 = vunpack.c.l.bf16 %v1151
        %v1278 = vunpack.c.h.bf16 %v1151
        %v1279 = vunpack.c.l.bf16 %v1152
        %v1280 = vunpack.c.h.bf16 %v1152
        %1281 = vadd.xlane.f32.xlu0 %v1153
        %v1282 = vpop.xlane.xlu0 %1281
        %1283 = vadd.xlane.f32.xlu0 %v1154
        %v1284 = vpop.xlane.xlu0 %1283
        %1285 = vadd.xlane.f32.xlu0 %v1155
        %v1286 = vpop.xlane.xlu0 %1285
        %1287 = vadd.xlane.f32.xlu0 %v1156
        %v1288 = vpop.xlane.xlu0 %1287
        %1289 = vadd.xlane.f32.xlu0 %v1157
        %v1290 = vpop.xlane.xlu0 %1289
        %1291 = vadd.xlane.f32.xlu0 %v1158
        %v1292 = vpop.xlane.xlu0 %1291
        %1293 = vadd.xlane.f32.xlu0 %v1159
        %v1294 = vpop.xlane.xlu0 %1293
        %1295 = vadd.xlane.f32.xlu0 %v1160
        %v1296 = vpop.xlane.xlu0 %1295
        %1297 = vadd.xlane.f32.xlu0 %v1161
        %v1298 = vpop.xlane.xlu0 %1297
        %1299 = vadd.xlane.f32.xlu0 %v1162
        %v1300 = vpop.xlane.xlu0 %1299
        %1301 = vadd.xlane.f32.xlu0 %v1163
        %v1302 = vpop.xlane.xlu0 %1301
        %1303 = vadd.xlane.f32.xlu0 %v1164
        %v1304 = vpop.xlane.xlu0 %1303
        %1305 = vadd.xlane.f32.xlu0 %v1165
        %v1306 = vpop.xlane.xlu0 %1305
        %1307 = vadd.xlane.f32.xlu0 %v1166
        %v1308 = vpop.xlane.xlu0 %1307
        %1309 = vadd.xlane.f32.xlu0 %v1167
        %v1310 = vpop.xlane.xlu0 %1309
        %1311 = vadd.xlane.f32.xlu0 %v1168
        %v1312 = vpop.xlane.xlu0 %1311
        %1313 = vadd.xlane.f32.xlu0 %v1169
        %v1314 = vpop.xlane.xlu0 %1313
        %1315 = vadd.xlane.f32.xlu0 %v1170
        %v1316 = vpop.xlane.xlu0 %1315
        %1317 = vadd.xlane.f32.xlu0 %v1171
        %v1318 = vpop.xlane.xlu0 %1317
        %1319 = vadd.xlane.f32.xlu0 %v1172
        %v1320 = vpop.xlane.xlu0 %1319
        %1321 = vadd.xlane.f32.xlu0 %v1173
        %v1322 = vpop.xlane.xlu0 %1321
        %1323 = vadd.xlane.f32.xlu0 %v1174
        %v1324 = vpop.xlane.xlu0 %1323
        %1325 = vadd.xlane.f32.xlu0 %v1175
        %v1326 = vpop.xlane.xlu0 %1325
        %1327 = vadd.xlane.f32.xlu0 %v1176
        %v1328 = vpop.xlane.xlu0 %1327
        %1329 = vadd.xlane.f32.xlu0 %v1177
        %v1330 = vpop.xlane.xlu0 %1329
        %1331 = vadd.xlane.f32.xlu0 %v1178
        %v1332 = vpop.xlane.xlu0 %1331
        %1333 = vadd.xlane.f32.xlu0 %v1179
        %v1334 = vpop.xlane.xlu0 %1333
        %1335 = vadd.xlane.f32.xlu0 %v1180
        %v1336 = vpop.xlane.xlu0 %1335
        %1337 = vadd.xlane.f32.xlu0 %v1181
        %v1338 = vpop.xlane.xlu0 %1337
        %1339 = vadd.xlane.f32.xlu0 %v1182
        %v1340 = vpop.xlane.xlu0 %1339
        %1341 = vadd.xlane.f32.xlu0 %v1183
        %v1342 = vpop.xlane.xlu0 %1341
        %1343 = vadd.xlane.f32.xlu0 %v1184
        %v1344 = vpop.xlane.xlu0 %1343
        %1345 = vadd.xlane.f32.xlu0 %v1185
        %v1346 = vpop.xlane.xlu0 %1345
        %1347 = vadd.xlane.f32.xlu0 %v1186
        %v1348 = vpop.xlane.xlu0 %1347
        %1349 = vadd.xlane.f32.xlu0 %v1187
        %v1350 = vpop.xlane.xlu0 %1349
        %1351 = vadd.xlane.f32.xlu0 %v1188
        %v1352 = vpop.xlane.xlu0 %1351
        %1353 = vadd.xlane.f32.xlu0 %v1189
        %v1354 = vpop.xlane.xlu0 %1353
        %1355 = vadd.xlane.f32.xlu0 %v1190
        %v1356 = vpop.xlane.xlu0 %1355
        %1357 = vadd.xlane.f32.xlu0 %v1191
        %v1358 = vpop.xlane.xlu0 %1357
        %1359 = vadd.xlane.f32.xlu0 %v1192
        %v1360 = vpop.xlane.xlu0 %1359
        %1361 = vadd.xlane.f32.xlu0 %v1193
        %v1362 = vpop.xlane.xlu0 %1361
        %1363 = vadd.xlane.f32.xlu0 %v1194
        %v1364 = vpop.xlane.xlu0 %1363
        %1365 = vadd.xlane.f32.xlu0 %v1195
        %v1366 = vpop.xlane.xlu0 %1365
        %1367 = vadd.xlane.f32.xlu0 %v1196
        %v1368 = vpop.xlane.xlu0 %1367
        %1369 = vadd.xlane.f32.xlu0 %v1197
        %v1370 = vpop.xlane.xlu0 %1369
        %1371 = vadd.xlane.f32.xlu0 %v1198
        %v1372 = vpop.xlane.xlu0 %1371
        %1373 = vadd.xlane.f32.xlu0 %v1199
        %v1374 = vpop.xlane.xlu0 %1373
        %1375 = vadd.xlane.f32.xlu0 %v1200
        %v1376 = vpop.xlane.xlu0 %1375
        %1377 = vadd.xlane.f32.xlu0 %v1201
        %v1378 = vpop.xlane.xlu0 %1377
        %1379 = vadd.xlane.f32.xlu0 %v1202
        %v1380 = vpop.xlane.xlu0 %1379
        %1381 = vadd.xlane.f32.xlu0 %v1203
        %v1382 = vpop.xlane.xlu0 %1381
        %1383 = vadd.xlane.f32.xlu0 %v1204
        %v1384 = vpop.xlane.xlu0 %1383
        %1385 = vadd.xlane.f32.xlu0 %v1205
        %v1386 = vpop.xlane.xlu0 %1385
        %1387 = vadd.xlane.f32.xlu0 %v1206
        %v1388 = vpop.xlane.xlu0 %1387
        %1389 = vadd.xlane.f32.xlu0 %v1207
        %v1390 = vpop.xlane.xlu0 %1389
        %1391 = vadd.xlane.f32.xlu0 %v1208
        %v1392 = vpop.xlane.xlu0 %1391
        %1393 = vadd.xlane.f32.xlu0 %v1209
        %v1394 = vpop.xlane.xlu0 %1393
        %1395 = vadd.xlane.f32.xlu0 %v1210
        %v1396 = vpop.xlane.xlu0 %1395
        %1397 = vadd.xlane.f32.xlu0 %v1211
        %v1398 = vpop.xlane.xlu0 %1397
        %1399 = vadd.xlane.f32.xlu0 %v1212
        %v1400 = vpop.xlane.xlu0 %1399
        %1401 = vadd.xlane.f32.xlu0 %v1213
        %v1402 = vpop.xlane.xlu0 %1401
        %1403 = vadd.xlane.f32.xlu0 %v1214
        %v1404 = vpop.xlane.xlu0 %1403
        %1405 = vadd.xlane.f32.xlu0 %v1215
        %v1406 = vpop.xlane.xlu0 %1405
        %1407 = vadd.xlane.f32.xlu0 %v1216
        %v1408 = vpop.xlane.xlu0 %1407
        %1409 = vadd.xlane.f32.xlu0 %v1217
        %v1410 = vpop.xlane.xlu0 %1409
        %1411 = vadd.xlane.f32.xlu0 %v1218
        %v1412 = vpop.xlane.xlu0 %1411
        %1413 = vadd.xlane.f32.xlu0 %v1219
        %v1414 = vpop.xlane.xlu0 %1413
        %1415 = vadd.xlane.f32.xlu0 %v1220
        %v1416 = vpop.xlane.xlu0 %1415
        %1417 = vadd.xlane.f32.xlu0 %v1221
        %v1418 = vpop.xlane.xlu0 %1417
        %1419 = vadd.xlane.f32.xlu0 %v1222
        %v1420 = vpop.xlane.xlu0 %1419
        %1421 = vadd.xlane.f32.xlu0 %v1223
        %v1422 = vpop.xlane.xlu0 %1421
        %1423 = vadd.xlane.f32.xlu0 %v1224
        %v1424 = vpop.xlane.xlu0 %1423
        %1425 = vadd.xlane.f32.xlu0 %v1225
        %v1426 = vpop.xlane.xlu0 %1425
        %1427 = vadd.xlane.f32.xlu0 %v1226
        %v1428 = vpop.xlane.xlu0 %1427
        %1429 = vadd.xlane.f32.xlu0 %v1227
        %v1430 = vpop.xlane.xlu0 %1429
        %1431 = vadd.xlane.f32.xlu0 %v1228
        %v1432 = vpop.xlane.xlu0 %1431
        %1433 = vadd.xlane.f32.xlu0 %v1229
        %v1434 = vpop.xlane.xlu0 %1433
        %1435 = vadd.xlane.f32.xlu0 %v1230
        %v1436 = vpop.xlane.xlu0 %1435
        %1437 = vadd.xlane.f32.xlu0 %v1231
        %v1438 = vpop.xlane.xlu0 %1437
        %1439 = vadd.xlane.f32.xlu0 %v1232
        %v1440 = vpop.xlane.xlu0 %1439
        %1441 = vadd.xlane.f32.xlu0 %v1233
        %v1442 = vpop.xlane.xlu0 %1441
        %1443 = vadd.xlane.f32.xlu0 %v1234
        %v1444 = vpop.xlane.xlu0 %1443
        %1445 = vadd.xlane.f32.xlu0 %v1235
        %v1446 = vpop.xlane.xlu0 %1445
        %1447 = vadd.xlane.f32.xlu0 %v1236
        %v1448 = vpop.xlane.xlu0 %1447
        %1449 = vadd.xlane.f32.xlu0 %v1237
        %v1450 = vpop.xlane.xlu0 %1449
        %1451 = vadd.xlane.f32.xlu0 %v1238
        %v1452 = vpop.xlane.xlu0 %1451
        %1453 = vadd.xlane.f32.xlu0 %v1239
        %v1454 = vpop.xlane.xlu0 %1453
        %1455 = vadd.xlane.f32.xlu0 %v1240
        %v1456 = vpop.xlane.xlu0 %1455
        %1457 = vadd.xlane.f32.xlu0 %v1241
        %v1458 = vpop.xlane.xlu0 %1457
        %1459 = vadd.xlane.f32.xlu0 %v1242
        %v1460 = vpop.xlane.xlu0 %1459
        %1461 = vadd.xlane.f32.xlu0 %v1243
        %v1462 = vpop.xlane.xlu0 %1461
        %1463 = vadd.xlane.f32.xlu0 %v1244
        %v1464 = vpop.xlane.xlu0 %1463
        %1465 = vadd.xlane.f32.xlu0 %v1245
        %v1466 = vpop.xlane.xlu0 %1465
        %1467 = vadd.xlane.f32.xlu0 %v1246
        %v1468 = vpop.xlane.xlu0 %1467
        %1469 = vadd.xlane.f32.xlu0 %v1247
        %v1470 = vpop.xlane.xlu0 %1469
        %1471 = vadd.xlane.f32.xlu0 %v1248
        %v1472 = vpop.xlane.xlu0 %1471
        %1473 = vadd.xlane.f32.xlu0 %v1249
        %v1474 = vpop.xlane.xlu0 %1473
        %1475 = vadd.xlane.f32.xlu0 %v1250
        %v1476 = vpop.xlane.xlu0 %1475
        %1477 = vadd.xlane.f32.xlu0 %v1251
        %v1478 = vpop.xlane.xlu0 %1477
        %1479 = vadd.xlane.f32.xlu0 %v1252
        %v1480 = vpop.xlane.xlu0 %1479
        %1481 = vadd.xlane.f32.xlu0 %v1253
        %v1482 = vpop.xlane.xlu0 %1481
        %1483 = vadd.xlane.f32.xlu0 %v1254
        %v1484 = vpop.xlane.xlu0 %1483
        %1485 = vadd.xlane.f32.xlu0 %v1255
        %v1486 = vpop.xlane.xlu0 %1485
        %1487 = vadd.xlane.f32.xlu0 %v1256
        %v1488 = vpop.xlane.xlu0 %1487
        %1489 = vadd.xlane.f32.xlu0 %v1257
        %v1490 = vpop.xlane.xlu0 %1489
        %1491 = vadd.xlane.f32.xlu0 %v1258
        %v1492 = vpop.xlane.xlu0 %1491
        %1493 = vadd.xlane.f32.xlu0 %v1259
        %v1494 = vpop.xlane.xlu0 %1493
        %1495 = vadd.xlane.f32.xlu0 %v1260
        %v1496 = vpop.xlane.xlu0 %1495
        %1497 = vadd.xlane.f32.xlu0 %v1261
        %v1498 = vpop.xlane.xlu0 %1497
        %1499 = vadd.xlane.f32.xlu0 %v1262
        %v1500 = vpop.xlane.xlu0 %1499
        %1501 = vadd.xlane.f32.xlu0 %v1263
        %v1502 = vpop.xlane.xlu0 %1501
        %1503 = vadd.xlane.f32.xlu0 %v1264
        %v1504 = vpop.xlane.xlu0 %1503
        %1505 = vadd.xlane.f32.xlu0 %v1265
        %v1506 = vpop.xlane.xlu0 %1505
        %1507 = vadd.xlane.f32.xlu0 %v1266
        %v1508 = vpop.xlane.xlu0 %1507
        %1509 = vadd.xlane.f32.xlu0 %v1267
        %v1510 = vpop.xlane.xlu0 %1509
        %1511 = vadd.xlane.f32.xlu0 %v1268
        %v1512 = vpop.xlane.xlu0 %1511
        %1513 = vadd.xlane.f32.xlu0 %v1269
        %v1514 = vpop.xlane.xlu0 %1513
        %1515 = vadd.xlane.f32.xlu0 %v1270
        %v1516 = vpop.xlane.xlu0 %1515
        %1517 = vadd.xlane.f32.xlu0 %v1271
        %v1518 = vpop.xlane.xlu0 %1517
        %1519 = vadd.xlane.f32.xlu0 %v1272
        %v1520 = vpop.xlane.xlu0 %1519
        %1521 = vadd.xlane.f32.xlu0 %v1273
        %v1522 = vpop.xlane.xlu0 %1521
        %1523 = vadd.xlane.f32.xlu0 %v1274
        %v1524 = vpop.xlane.xlu0 %1523
        %1525 = vadd.xlane.f32.xlu0 %v1275
        %v1526 = vpop.xlane.xlu0 %1525
        %1527 = vadd.xlane.f32.xlu0 %v1276
        %v1528 = vpop.xlane.xlu0 %1527
        %1529 = vadd.xlane.f32.xlu0 %v1277
        %v1530 = vpop.xlane.xlu0 %1529
        %1531 = vadd.xlane.f32.xlu0 %v1278
        %v1532 = vpop.xlane.xlu0 %1531
        %1533 = vadd.xlane.f32.xlu0 %v1279
        %v1534 = vpop.xlane.xlu0 %1533
        %1535 = vadd.xlane.f32.xlu0 %v1280
        %v1536 = vpop.xlane.xlu0 %1535
        %v1537 = vlaneseq
        %v1538 = vand.u32 %v1537, 127
        %vm1539 = vcmp.lt.s32.totalorder %v1538, 8
        %v1668 = vlaneseq
        %v1669 = vshrl.u32 %v1668, 7
        %v1670 = vsub.s32 %v1538, %v1669
        %v1671 = vrot.slane %v1282, %v1670
        %v1672 = vadd.s32 %v1538, 4294967288
        %v1673 = vlaneseq
        %v1674 = vshrl.u32 %v1673, 7
        %v1675 = vsub.s32 %v1672, %v1674
        %v1676 = vrot.slane %v1284, %v1675
        %vm1677 = vcmask 130112
        %v1678 = vsel %vm1677, %v1676, %v1671
        %v1679 = vadd.s32 %v1538, 4294967280
        %v1680 = vlaneseq
        %v1681 = vshrl.u32 %v1680, 7
        %v1682 = vsub.s32 %v1679, %v1681
        %v1683 = vrot.slane %v1286, %v1682
        %vm1684 = vcmask 195712
        %v1685 = vsel %vm1684, %v1683, %v1678
        %v1686 = vadd.s32 %v1538, 4294967272
        %v1687 = vlaneseq
        %v1688 = vshrl.u32 %v1687, 7
        %v1689 = vsub.s32 %v1686, %v1688
        %v1690 = vrot.slane %v1288, %v1689
        %vm1691 = vcmask 261312
        %v1692 = vsel %vm1691, %v1690, %v1685
        %v1693 = vadd.s32 %v1538, 4294967264
        %v1694 = vlaneseq
        %v1695 = vshrl.u32 %v1694, 7
        %v1696 = vsub.s32 %v1693, %v1695
        %v1697 = vrot.slane %v1290, %v1696
        %vm1698 = vcmask 326912
        %v1699 = vsel %vm1698, %v1697, %v1692
        %v1700 = vadd.s32 %v1538, 4294967256
        %v1701 = vlaneseq
        %v1702 = vshrl.u32 %v1701, 7
        %v1703 = vsub.s32 %v1700, %v1702
        %v1704 = vrot.slane %v1292, %v1703
        %vm1705 = vcmask 392512
        %v1706 = vsel %vm1705, %v1704, %v1699
        %v1707 = vadd.s32 %v1538, 4294967248
        %v1708 = vlaneseq
        %v1709 = vshrl.u32 %v1708, 7
        %v1710 = vsub.s32 %v1707, %v1709
        %v1711 = vrot.slane %v1294, %v1710
        %vm1712 = vcmask 458112
        %v1713 = vsel %vm1712, %v1711, %v1706
        %v1714 = vadd.s32 %v1538, 4294967240
        %v1715 = vlaneseq
        %v1716 = vshrl.u32 %v1715, 7
        %v1717 = vsub.s32 %v1714, %v1716
        %v1718 = vrot.slane %v1296, %v1717
        %vm1719 = vcmask 523712
        %v1720 = vsel %vm1719, %v1718, %v1713
        %v1721 = vadd.s32 %v1538, 4294967232
        %v1722 = vlaneseq
        %v1723 = vshrl.u32 %v1722, 7
        %v1724 = vsub.s32 %v1721, %v1723
        %v1725 = vrot.slane %v1298, %v1724
        %vm1726 = vcmask 589312
        %v1727 = vsel %vm1726, %v1725, %v1720
        %v1728 = vadd.s32 %v1538, 4294967224
        %v1729 = vlaneseq
        %v1730 = vshrl.u32 %v1729, 7
        %v1731 = vsub.s32 %v1728, %v1730
        %v1732 = vrot.slane %v1300, %v1731
        %vm1733 = vcmask 654912
        %v1734 = vsel %vm1733, %v1732, %v1727
        %v1735 = vadd.s32 %v1538, 4294967216
        %v1736 = vlaneseq
        %v1737 = vshrl.u32 %v1736, 7
        %v1738 = vsub.s32 %v1735, %v1737
        %v1739 = vrot.slane %v1302, %v1738
        %vm1740 = vcmask 720512
        %v1741 = vsel %vm1740, %v1739, %v1734
        %v1742 = vadd.s32 %v1538, 4294967208
        %v1743 = vlaneseq
        %v1744 = vshrl.u32 %v1743, 7
        %v1745 = vsub.s32 %v1742, %v1744
        %v1746 = vrot.slane %v1304, %v1745
        %vm1747 = vcmask 786112
        %v1748 = vsel %vm1747, %v1746, %v1741
        %v1749 = vadd.s32 %v1538, 4294967200
        %v1750 = vlaneseq
        %v1751 = vshrl.u32 %v1750, 7
        %v1752 = vsub.s32 %v1749, %v1751
        %v1753 = vrot.slane %v1306, %v1752
        %vm1754 = vcmask 851712
        %v1755 = vsel %vm1754, %v1753, %v1748
        %v1756 = vadd.s32 %v1538, 4294967192
        %v1757 = vlaneseq
        %v1758 = vshrl.u32 %v1757, 7
        %v1759 = vsub.s32 %v1756, %v1758
        %v1760 = vrot.slane %v1308, %v1759
        %vm1761 = vcmask 917312
        %v1762 = vsel %vm1761, %v1760, %v1755
        %v1763 = vadd.s32 %v1538, 4294967184
        %v1764 = vlaneseq
        %v1765 = vshrl.u32 %v1764, 7
        %v1766 = vsub.s32 %v1763, %v1765
        %v1767 = vrot.slane %v1310, %v1766
        %vm1768 = vcmask 982912
        %v1769 = vsel %vm1768, %v1767, %v1762
        %v1770 = vadd.s32 %v1538, 4294967176
        %v1771 = vlaneseq
        %v1772 = vshrl.u32 %v1771, 7
        %v1773 = vsub.s32 %v1770, %v1772
        %v1774 = vrot.slane %v1312, %v1773
        %vm1775 = vcmask 1048512
        %v1776 = vsel %vm1775, %v1774, %v1769
        %v1777 = vlaneseq
        %v1778 = vshrl.u32 %v1777, 7
        %v1779 = vsub.s32 %v1538, %v1778
        %v1780 = vrot.slane %v1314, %v1779
        %v1781 = vlaneseq
        %v1782 = vshrl.u32 %v1781, 7
        %v1783 = vsub.s32 %v1672, %v1782
        %v1784 = vrot.slane %v1316, %v1783
        %v1785 = vsel %vm1677, %v1784, %v1780
        %v1786 = vlaneseq
        %v1787 = vshrl.u32 %v1786, 7
        %v1788 = vsub.s32 %v1679, %v1787
        %v1789 = vrot.slane %v1318, %v1788
        %v1790 = vsel %vm1684, %v1789, %v1785
        %v1791 = vlaneseq
        %v1792 = vshrl.u32 %v1791, 7
        %v1793 = vsub.s32 %v1686, %v1792
        %v1794 = vrot.slane %v1320, %v1793
        %v1795 = vsel %vm1691, %v1794, %v1790
        %v1796 = vlaneseq
        %v1797 = vshrl.u32 %v1796, 7
        %v1798 = vsub.s32 %v1693, %v1797
        %v1799 = vrot.slane %v1322, %v1798
        %v1800 = vsel %vm1698, %v1799, %v1795
        %v1801 = vlaneseq
        %v1802 = vshrl.u32 %v1801, 7
        %v1803 = vsub.s32 %v1700, %v1802
        %v1804 = vrot.slane %v1324, %v1803
        %v1805 = vsel %vm1705, %v1804, %v1800
        %v1806 = vlaneseq
        %v1807 = vshrl.u32 %v1806, 7
        %v1808 = vsub.s32 %v1707, %v1807
        %v1809 = vrot.slane %v1326, %v1808
        %v1810 = vsel %vm1712, %v1809, %v1805
        %v1811 = vlaneseq
        %v1812 = vshrl.u32 %v1811, 7
        %v1813 = vsub.s32 %v1714, %v1812
        %v1814 = vrot.slane %v1328, %v1813
        %v1815 = vsel %vm1719, %v1814, %v1810
        %v1816 = vlaneseq
        %v1817 = vshrl.u32 %v1816, 7
        %v1818 = vsub.s32 %v1721, %v1817
        %v1819 = vrot.slane %v1330, %v1818
        %v1820 = vsel %vm1726, %v1819, %v1815
        %v1821 = vlaneseq
        %v1822 = vshrl.u32 %v1821, 7
        %v1823 = vsub.s32 %v1728, %v1822
        %v1824 = vrot.slane %v1332, %v1823
        %v1825 = vsel %vm1733, %v1824, %v1820
        %v1826 = vlaneseq
        %v1827 = vshrl.u32 %v1826, 7
        %v1828 = vsub.s32 %v1735, %v1827
        %v1829 = vrot.slane %v1334, %v1828
        %v1830 = vsel %vm1740, %v1829, %v1825
        %v1831 = vlaneseq
        %v1832 = vshrl.u32 %v1831, 7
        %v1833 = vsub.s32 %v1742, %v1832
        %v1834 = vrot.slane %v1336, %v1833
        %v1835 = vsel %vm1747, %v1834, %v1830
        %v1836 = vlaneseq
        %v1837 = vshrl.u32 %v1836, 7
        %v1838 = vsub.s32 %v1749, %v1837
        %v1839 = vrot.slane %v1338, %v1838
        %v1840 = vsel %vm1754, %v1839, %v1835
        %v1841 = vlaneseq
        %v1842 = vshrl.u32 %v1841, 7
        %v1843 = vsub.s32 %v1756, %v1842
        %v1844 = vrot.slane %v1340, %v1843
        %v1845 = vsel %vm1761, %v1844, %v1840
        %v1846 = vlaneseq
        %v1847 = vshrl.u32 %v1846, 7
        %v1848 = vsub.s32 %v1763, %v1847
        %v1849 = vrot.slane %v1342, %v1848
        %v1850 = vsel %vm1768, %v1849, %v1845
        %v1851 = vlaneseq
        %v1852 = vshrl.u32 %v1851, 7
        %v1853 = vsub.s32 %v1770, %v1852
        %v1854 = vrot.slane %v1344, %v1853
        %v1855 = vsel %vm1775, %v1854, %v1850
        %v1856 = vlaneseq
        %v1857 = vshrl.u32 %v1856, 7
        %v1858 = vsub.s32 %v1538, %v1857
        %v1859 = vrot.slane %v1346, %v1858
        %v1860 = vlaneseq
        %v1861 = vshrl.u32 %v1860, 7
        %v1862 = vsub.s32 %v1672, %v1861
        %v1863 = vrot.slane %v1348, %v1862
        %v1864 = vsel %vm1677, %v1863, %v1859
        %v1865 = vlaneseq
        %v1866 = vshrl.u32 %v1865, 7
        %v1867 = vsub.s32 %v1679, %v1866
        %v1868 = vrot.slane %v1350, %v1867
        %v1869 = vsel %vm1684, %v1868, %v1864
        %v1870 = vlaneseq
        %v1871 = vshrl.u32 %v1870, 7
        %v1872 = vsub.s32 %v1686, %v1871
        %v1873 = vrot.slane %v1352, %v1872
        %v1874 = vsel %vm1691, %v1873, %v1869
        %v1875 = vlaneseq
        %v1876 = vshrl.u32 %v1875, 7
        %v1877 = vsub.s32 %v1693, %v1876
        %v1878 = vrot.slane %v1354, %v1877
        %v1879 = vsel %vm1698, %v1878, %v1874
        %v1880 = vlaneseq
        %v1881 = vshrl.u32 %v1880, 7
        %v1882 = vsub.s32 %v1700, %v1881
        %v1883 = vrot.slane %v1356, %v1882
        %v1884 = vsel %vm1705, %v1883, %v1879
        %v1885 = vlaneseq
        %v1886 = vshrl.u32 %v1885, 7
        %v1887 = vsub.s32 %v1707, %v1886
        %v1888 = vrot.slane %v1358, %v1887
        %v1889 = vsel %vm1712, %v1888, %v1884
        %v1890 = vlaneseq
        %v1891 = vshrl.u32 %v1890, 7
        %v1892 = vsub.s32 %v1714, %v1891
        %v1893 = vrot.slane %v1360, %v1892
        %v1894 = vsel %vm1719, %v1893, %v1889
        %v1895 = vlaneseq
        %v1896 = vshrl.u32 %v1895, 7
        %v1897 = vsub.s32 %v1721, %v1896
        %v1898 = vrot.slane %v1362, %v1897
        %v1899 = vsel %vm1726, %v1898, %v1894
        %v1900 = vlaneseq
        %v1901 = vshrl.u32 %v1900, 7
        %v1902 = vsub.s32 %v1728, %v1901
        %v1903 = vrot.slane %v1364, %v1902
        %v1904 = vsel %vm1733, %v1903, %v1899
        %v1905 = vlaneseq
        %v1906 = vshrl.u32 %v1905, 7
        %v1907 = vsub.s32 %v1735, %v1906
        %v1908 = vrot.slane %v1366, %v1907
        %v1909 = vsel %vm1740, %v1908, %v1904
        %v1910 = vlaneseq
        %v1911 = vshrl.u32 %v1910, 7
        %v1912 = vsub.s32 %v1742, %v1911
        %v1913 = vrot.slane %v1368, %v1912
        %v1914 = vsel %vm1747, %v1913, %v1909
        %v1915 = vlaneseq
        %v1916 = vshrl.u32 %v1915, 7
        %v1917 = vsub.s32 %v1749, %v1916
        %v1918 = vrot.slane %v1370, %v1917
        %v1919 = vsel %vm1754, %v1918, %v1914
        %v1920 = vlaneseq
        %v1921 = vshrl.u32 %v1920, 7
        %v1922 = vsub.s32 %v1756, %v1921
        %v1923 = vrot.slane %v1372, %v1922
        %v1924 = vsel %vm1761, %v1923, %v1919
        %v1925 = vlaneseq
        %v1926 = vshrl.u32 %v1925, 7
        %v1927 = vsub.s32 %v1763, %v1926
        %v1928 = vrot.slane %v1374, %v1927
        %v1929 = vsel %vm1768, %v1928, %v1924
        %v1930 = vlaneseq
        %v1931 = vshrl.u32 %v1930, 7
        %v1932 = vsub.s32 %v1770, %v1931
        %v1933 = vrot.slane %v1376, %v1932
        %v1934 = vsel %vm1775, %v1933, %v1929
        %v1935 = vlaneseq
        %v1936 = vshrl.u32 %v1935, 7
        %v1937 = vsub.s32 %v1538, %v1936
        %v1938 = vrot.slane %v1378, %v1937
        %v1939 = vlaneseq
        %v1940 = vshrl.u32 %v1939, 7
        %v1941 = vsub.s32 %v1672, %v1940
        %v1942 = vrot.slane %v1380, %v1941
        %v1943 = vsel %vm1677, %v1942, %v1938
        %v1944 = vlaneseq
        %v1945 = vshrl.u32 %v1944, 7
        %v1946 = vsub.s32 %v1679, %v1945
        %v1947 = vrot.slane %v1382, %v1946
        %v1948 = vsel %vm1684, %v1947, %v1943
        %v1949 = vlaneseq
        %v1950 = vshrl.u32 %v1949, 7
        %v1951 = vsub.s32 %v1686, %v1950
        %v1952 = vrot.slane %v1384, %v1951
        %v1953 = vsel %vm1691, %v1952, %v1948
        %v1954 = vlaneseq
        %v1955 = vshrl.u32 %v1954, 7
        %v1956 = vsub.s32 %v1693, %v1955
        %v1957 = vrot.slane %v1386, %v1956
        %v1958 = vsel %vm1698, %v1957, %v1953
        %v1959 = vlaneseq
        %v1960 = vshrl.u32 %v1959, 7
        %v1961 = vsub.s32 %v1700, %v1960
        %v1962 = vrot.slane %v1388, %v1961
        %v1963 = vsel %vm1705, %v1962, %v1958
        %v1964 = vlaneseq
        %v1965 = vshrl.u32 %v1964, 7
        %v1966 = vsub.s32 %v1707, %v1965
        %v1967 = vrot.slane %v1390, %v1966
        %v1968 = vsel %vm1712, %v1967, %v1963
        %v1969 = vlaneseq
        %v1970 = vshrl.u32 %v1969, 7
        %v1971 = vsub.s32 %v1714, %v1970
        %v1972 = vrot.slane %v1392, %v1971
        %v1973 = vsel %vm1719, %v1972, %v1968
        %v1974 = vlaneseq
        %v1975 = vshrl.u32 %v1974, 7
        %v1976 = vsub.s32 %v1721, %v1975
        %v1977 = vrot.slane %v1394, %v1976
        %v1978 = vsel %vm1726, %v1977, %v1973
        %v1979 = vlaneseq
        %v1980 = vshrl.u32 %v1979, 7
        %v1981 = vsub.s32 %v1728, %v1980
        %v1982 = vrot.slane %v1396, %v1981
        %v1983 = vsel %vm1733, %v1982, %v1978
        %v1984 = vlaneseq
        %v1985 = vshrl.u32 %v1984, 7
        %v1986 = vsub.s32 %v1735, %v1985
        %v1987 = vrot.slane %v1398, %v1986
        %v1988 = vsel %vm1740, %v1987, %v1983
        %v1989 = vlaneseq
        %v1990 = vshrl.u32 %v1989, 7
        %v1991 = vsub.s32 %v1742, %v1990
        %v1992 = vrot.slane %v1400, %v1991
        %v1993 = vsel %vm1747, %v1992, %v1988
        %v1994 = vlaneseq
        %v1995 = vshrl.u32 %v1994, 7
        %v1996 = vsub.s32 %v1749, %v1995
        %v1997 = vrot.slane %v1402, %v1996
        %v1998 = vsel %vm1754, %v1997, %v1993
        %v1999 = vlaneseq
        %v2000 = vshrl.u32 %v1999, 7
        %v2001 = vsub.s32 %v1756, %v2000
        %v2002 = vrot.slane %v1404, %v2001
        %v2003 = vsel %vm1761, %v2002, %v1998
        %v2004 = vlaneseq
        %v2005 = vshrl.u32 %v2004, 7
        %v2006 = vsub.s32 %v1763, %v2005
        %v2007 = vrot.slane %v1406, %v2006
        %v2008 = vsel %vm1768, %v2007, %v2003
        %v2009 = vlaneseq
        %v2010 = vshrl.u32 %v2009, 7
        %v2011 = vsub.s32 %v1770, %v2010
        %v2012 = vrot.slane %v1408, %v2011
        %v2013 = vsel %vm1775, %v2012, %v2008
        %v2014 = vlaneseq
        %v2015 = vshrl.u32 %v2014, 7
        %v2016 = vsub.s32 %v1538, %v2015
        %v2017 = vrot.slane %v1410, %v2016
        %v2018 = vlaneseq
        %v2019 = vshrl.u32 %v2018, 7
        %v2020 = vsub.s32 %v1672, %v2019
        %v2021 = vrot.slane %v1412, %v2020
        %v2022 = vsel %vm1677, %v2021, %v2017
        %v2023 = vlaneseq
        %v2024 = vshrl.u32 %v2023, 7
        %v2025 = vsub.s32 %v1679, %v2024
        %v2026 = vrot.slane %v1414, %v2025
        %v2027 = vsel %vm1684, %v2026, %v2022
        %v2028 = vlaneseq
        %v2029 = vshrl.u32 %v2028, 7
        %v2030 = vsub.s32 %v1686, %v2029
        %v2031 = vrot.slane %v1416, %v2030
        %v2032 = vsel %vm1691, %v2031, %v2027
        %v2033 = vlaneseq
        %v2034 = vshrl.u32 %v2033, 7
        %v2035 = vsub.s32 %v1693, %v2034
        %v2036 = vrot.slane %v1418, %v2035
        %v2037 = vsel %vm1698, %v2036, %v2032
        %v2038 = vlaneseq
        %v2039 = vshrl.u32 %v2038, 7
        %v2040 = vsub.s32 %v1700, %v2039
        %v2041 = vrot.slane %v1420, %v2040
        %v2042 = vsel %vm1705, %v2041, %v2037
        %v2043 = vlaneseq
        %v2044 = vshrl.u32 %v2043, 7
        %v2045 = vsub.s32 %v1707, %v2044
        %v2046 = vrot.slane %v1422, %v2045
        %v2047 = vsel %vm1712, %v2046, %v2042
        %v2048 = vlaneseq
        %v2049 = vshrl.u32 %v2048, 7
        %v2050 = vsub.s32 %v1714, %v2049
        %v2051 = vrot.slane %v1424, %v2050
        %v2052 = vsel %vm1719, %v2051, %v2047
        %v2053 = vlaneseq
        %v2054 = vshrl.u32 %v2053, 7
        %v2055 = vsub.s32 %v1721, %v2054
        %v2056 = vrot.slane %v1426, %v2055
        %v2057 = vsel %vm1726, %v2056, %v2052
        %v2058 = vlaneseq
        %v2059 = vshrl.u32 %v2058, 7
        %v2060 = vsub.s32 %v1728, %v2059
        %v2061 = vrot.slane %v1428, %v2060
        %v2062 = vsel %vm1733, %v2061, %v2057
        %v2063 = vlaneseq
        %v2064 = vshrl.u32 %v2063, 7
        %v2065 = vsub.s32 %v1735, %v2064
        %v2066 = vrot.slane %v1430, %v2065
        %v2067 = vsel %vm1740, %v2066, %v2062
        %v2068 = vlaneseq
        %v2069 = vshrl.u32 %v2068, 7
        %v2070 = vsub.s32 %v1742, %v2069
        %v2071 = vrot.slane %v1432, %v2070
        %v2072 = vsel %vm1747, %v2071, %v2067
        %v2073 = vlaneseq
        %v2074 = vshrl.u32 %v2073, 7
        %v2075 = vsub.s32 %v1749, %v2074
        %v2076 = vrot.slane %v1434, %v2075
        %v2077 = vsel %vm1754, %v2076, %v2072
        %v2078 = vlaneseq
        %v2079 = vshrl.u32 %v2078, 7
        %v2080 = vsub.s32 %v1756, %v2079
        %v2081 = vrot.slane %v1436, %v2080
        %v2082 = vsel %vm1761, %v2081, %v2077
        %v2083 = vlaneseq
        %v2084 = vshrl.u32 %v2083, 7
        %v2085 = vsub.s32 %v1763, %v2084
        %v2086 = vrot.slane %v1438, %v2085
        %v2087 = vsel %vm1768, %v2086, %v2082
        %v2088 = vlaneseq
        %v2089 = vshrl.u32 %v2088, 7
        %v2090 = vsub.s32 %v1770, %v2089
        %v2091 = vrot.slane %v1440, %v2090
        %v2092 = vsel %vm1775, %v2091, %v2087
        %v2093 = vlaneseq
        %v2094 = vshrl.u32 %v2093, 7
        %v2095 = vsub.s32 %v1538, %v2094
        %v2096 = vrot.slane %v1442, %v2095
        %v2097 = vlaneseq
        %v2098 = vshrl.u32 %v2097, 7
        %v2099 = vsub.s32 %v1672, %v2098
        %v2100 = vrot.slane %v1444, %v2099
        %v2101 = vsel %vm1677, %v2100, %v2096
        %v2102 = vlaneseq
        %v2103 = vshrl.u32 %v2102, 7
        %v2104 = vsub.s32 %v1679, %v2103
        %v2105 = vrot.slane %v1446, %v2104
        %v2106 = vsel %vm1684, %v2105, %v2101
        %v2107 = vlaneseq
        %v2108 = vshrl.u32 %v2107, 7
        %v2109 = vsub.s32 %v1686, %v2108
        %v2110 = vrot.slane %v1448, %v2109
        %v2111 = vsel %vm1691, %v2110, %v2106
        %v2112 = vlaneseq
        %v2113 = vshrl.u32 %v2112, 7
        %v2114 = vsub.s32 %v1693, %v2113
        %v2115 = vrot.slane %v1450, %v2114
        %v2116 = vsel %vm1698, %v2115, %v2111
        %v2117 = vlaneseq
        %v2118 = vshrl.u32 %v2117, 7
        %v2119 = vsub.s32 %v1700, %v2118
        %v2120 = vrot.slane %v1452, %v2119
        %v2121 = vsel %vm1705, %v2120, %v2116
        %v2122 = vlaneseq
        %v2123 = vshrl.u32 %v2122, 7
        %v2124 = vsub.s32 %v1707, %v2123
        %v2125 = vrot.slane %v1454, %v2124
        %v2126 = vsel %vm1712, %v2125, %v2121
        %v2127 = vlaneseq
        %v2128 = vshrl.u32 %v2127, 7
        %v2129 = vsub.s32 %v1714, %v2128
        %v2130 = vrot.slane %v1456, %v2129
        %v2131 = vsel %vm1719, %v2130, %v2126
        %v2132 = vlaneseq
        %v2133 = vshrl.u32 %v2132, 7
        %v2134 = vsub.s32 %v1721, %v2133
        %v2135 = vrot.slane %v1458, %v2134
        %v2136 = vsel %vm1726, %v2135, %v2131
        %v2137 = vlaneseq
        %v2138 = vshrl.u32 %v2137, 7
        %v2139 = vsub.s32 %v1728, %v2138
        %v2140 = vrot.slane %v1460, %v2139
        %v2141 = vsel %vm1733, %v2140, %v2136
        %v2142 = vlaneseq
        %v2143 = vshrl.u32 %v2142, 7
        %v2144 = vsub.s32 %v1735, %v2143
        %v2145 = vrot.slane %v1462, %v2144
        %v2146 = vsel %vm1740, %v2145, %v2141
        %v2147 = vlaneseq
        %v2148 = vshrl.u32 %v2147, 7
        %v2149 = vsub.s32 %v1742, %v2148
        %v2150 = vrot.slane %v1464, %v2149
        %v2151 = vsel %vm1747, %v2150, %v2146
        %v2152 = vlaneseq
        %v2153 = vshrl.u32 %v2152, 7
        %v2154 = vsub.s32 %v1749, %v2153
        %v2155 = vrot.slane %v1466, %v2154
        %v2156 = vsel %vm1754, %v2155, %v2151
        %v2157 = vlaneseq
        %v2158 = vshrl.u32 %v2157, 7
        %v2159 = vsub.s32 %v1756, %v2158
        %v2160 = vrot.slane %v1468, %v2159
        %v2161 = vsel %vm1761, %v2160, %v2156
        %v2162 = vlaneseq
        %v2163 = vshrl.u32 %v2162, 7
        %v2164 = vsub.s32 %v1763, %v2163
        %v2165 = vrot.slane %v1470, %v2164
        %v2166 = vsel %vm1768, %v2165, %v2161
        %v2167 = vlaneseq
        %v2168 = vshrl.u32 %v2167, 7
        %v2169 = vsub.s32 %v1770, %v2168
        %v2170 = vrot.slane %v1472, %v2169
        %v2171 = vsel %vm1775, %v2170, %v2166
        %v2172 = vlaneseq
        %v2173 = vshrl.u32 %v2172, 7
        %v2174 = vsub.s32 %v1538, %v2173
        %v2175 = vrot.slane %v1474, %v2174
        %v2176 = vlaneseq
        %v2177 = vshrl.u32 %v2176, 7
        %v2178 = vsub.s32 %v1672, %v2177
        %v2179 = vrot.slane %v1476, %v2178
        %v2180 = vsel %vm1677, %v2179, %v2175
        %v2181 = vlaneseq
        %v2182 = vshrl.u32 %v2181, 7
        %v2183 = vsub.s32 %v1679, %v2182
        %v2184 = vrot.slane %v1478, %v2183
        %v2185 = vsel %vm1684, %v2184, %v2180
        %v2186 = vlaneseq
        %v2187 = vshrl.u32 %v2186, 7
        %v2188 = vsub.s32 %v1686, %v2187
        %v2189 = vrot.slane %v1480, %v2188
        %v2190 = vsel %vm1691, %v2189, %v2185
        %v2191 = vlaneseq
        %v2192 = vshrl.u32 %v2191, 7
        %v2193 = vsub.s32 %v1693, %v2192
        %v2194 = vrot.slane %v1482, %v2193
        %v2195 = vsel %vm1698, %v2194, %v2190
        %v2196 = vlaneseq
        %v2197 = vshrl.u32 %v2196, 7
        %v2198 = vsub.s32 %v1700, %v2197
        %v2199 = vrot.slane %v1484, %v2198
        %v2200 = vsel %vm1705, %v2199, %v2195
        %v2201 = vlaneseq
        %v2202 = vshrl.u32 %v2201, 7
        %v2203 = vsub.s32 %v1707, %v2202
        %v2204 = vrot.slane %v1486, %v2203
        %v2205 = vsel %vm1712, %v2204, %v2200
        %v2206 = vlaneseq
        %v2207 = vshrl.u32 %v2206, 7
        %v2208 = vsub.s32 %v1714, %v2207
        %v2209 = vrot.slane %v1488, %v2208
        %v2210 = vsel %vm1719, %v2209, %v2205
        %v2211 = vlaneseq
        %v2212 = vshrl.u32 %v2211, 7
        %v2213 = vsub.s32 %v1721, %v2212
        %v2214 = vrot.slane %v1490, %v2213
        %v2215 = vsel %vm1726, %v2214, %v2210
        %v2216 = vlaneseq
        %v2217 = vshrl.u32 %v2216, 7
        %v2218 = vsub.s32 %v1728, %v2217
        %v2219 = vrot.slane %v1492, %v2218
        %v2220 = vsel %vm1733, %v2219, %v2215
        %v2221 = vlaneseq
        %v2222 = vshrl.u32 %v2221, 7
        %v2223 = vsub.s32 %v1735, %v2222
        %v2224 = vrot.slane %v1494, %v2223
        %v2225 = vsel %vm1740, %v2224, %v2220
        %v2226 = vlaneseq
        %v2227 = vshrl.u32 %v2226, 7
        %v2228 = vsub.s32 %v1742, %v2227
        %v2229 = vrot.slane %v1496, %v2228
        %v2230 = vsel %vm1747, %v2229, %v2225
        %v2231 = vlaneseq
        %v2232 = vshrl.u32 %v2231, 7
        %v2233 = vsub.s32 %v1749, %v2232
        %v2234 = vrot.slane %v1498, %v2233
        %v2235 = vsel %vm1754, %v2234, %v2230
        %v2236 = vlaneseq
        %v2237 = vshrl.u32 %v2236, 7
        %v2238 = vsub.s32 %v1756, %v2237
        %v2239 = vrot.slane %v1500, %v2238
        %v2240 = vsel %vm1761, %v2239, %v2235
        %v2241 = vlaneseq
        %v2242 = vshrl.u32 %v2241, 7
        %v2243 = vsub.s32 %v1763, %v2242
        %v2244 = vrot.slane %v1502, %v2243
        %v2245 = vsel %vm1768, %v2244, %v2240
        %v2246 = vlaneseq
        %v2247 = vshrl.u32 %v2246, 7
        %v2248 = vsub.s32 %v1770, %v2247
        %v2249 = vrot.slane %v1504, %v2248
        %v2250 = vsel %vm1775, %v2249, %v2245
        %v2251 = vlaneseq
        %v2252 = vshrl.u32 %v2251, 7
        %v2253 = vsub.s32 %v1538, %v2252
        %v2254 = vrot.slane %v1506, %v2253
        %v2255 = vlaneseq
        %v2256 = vshrl.u32 %v2255, 7
        %v2257 = vsub.s32 %v1672, %v2256
        %v2258 = vrot.slane %v1508, %v2257
        %v2259 = vsel %vm1677, %v2258, %v2254
        %v2260 = vlaneseq
        %v2261 = vshrl.u32 %v2260, 7
        %v2262 = vsub.s32 %v1679, %v2261
        %v2263 = vrot.slane %v1510, %v2262
        %v2264 = vsel %vm1684, %v2263, %v2259
        %v2265 = vlaneseq
        %v2266 = vshrl.u32 %v2265, 7
        %v2267 = vsub.s32 %v1686, %v2266
        %v2268 = vrot.slane %v1512, %v2267
        %v2269 = vsel %vm1691, %v2268, %v2264
        %v2270 = vlaneseq
        %v2271 = vshrl.u32 %v2270, 7
        %v2272 = vsub.s32 %v1693, %v2271
        %v2273 = vrot.slane %v1514, %v2272
        %v2274 = vsel %vm1698, %v2273, %v2269
        %v2275 = vlaneseq
        %v2276 = vshrl.u32 %v2275, 7
        %v2277 = vsub.s32 %v1700, %v2276
        %v2278 = vrot.slane %v1516, %v2277
        %v2279 = vsel %vm1705, %v2278, %v2274
        %v2280 = vlaneseq
        %v2281 = vshrl.u32 %v2280, 7
        %v2282 = vsub.s32 %v1707, %v2281
        %v2283 = vrot.slane %v1518, %v2282
        %v2284 = vsel %vm1712, %v2283, %v2279
        %v2285 = vlaneseq
        %v2286 = vshrl.u32 %v2285, 7
        %v2287 = vsub.s32 %v1714, %v2286
        %v2288 = vrot.slane %v1520, %v2287
        %v2289 = vsel %vm1719, %v2288, %v2284
        %v2290 = vlaneseq
        %v2291 = vshrl.u32 %v2290, 7
        %v2292 = vsub.s32 %v1721, %v2291
        %v2293 = vrot.slane %v1522, %v2292
        %v2294 = vsel %vm1726, %v2293, %v2289
        %v2295 = vlaneseq
        %v2296 = vshrl.u32 %v2295, 7
        %v2297 = vsub.s32 %v1728, %v2296
        %v2298 = vrot.slane %v1524, %v2297
        %v2299 = vsel %vm1733, %v2298, %v2294
        %v2300 = vlaneseq
        %v2301 = vshrl.u32 %v2300, 7
        %v2302 = vsub.s32 %v1735, %v2301
        %v2303 = vrot.slane %v1526, %v2302
        %v2304 = vsel %vm1740, %v2303, %v2299
        %v2305 = vlaneseq
        %v2306 = vshrl.u32 %v2305, 7
        %v2307 = vsub.s32 %v1742, %v2306
        %v2308 = vrot.slane %v1528, %v2307
        %v2309 = vsel %vm1747, %v2308, %v2304
        %v2310 = vlaneseq
        %v2311 = vshrl.u32 %v2310, 7
        %v2312 = vsub.s32 %v1749, %v2311
        %v2313 = vrot.slane %v1530, %v2312
        %v2314 = vsel %vm1754, %v2313, %v2309
        %v2315 = vlaneseq
        %v2316 = vshrl.u32 %v2315, 7
        %v2317 = vsub.s32 %v1756, %v2316
        %v2318 = vrot.slane %v1532, %v2317
        %v2319 = vsel %vm1761, %v2318, %v2314
        %v2320 = vlaneseq
        %v2321 = vshrl.u32 %v2320, 7
        %v2322 = vsub.s32 %v1763, %v2321
        %v2323 = vrot.slane %v1534, %v2322
        %v2324 = vsel %vm1768, %v2323, %v2319
        %v2325 = vlaneseq
        %v2326 = vshrl.u32 %v2325, 7
        %v2327 = vsub.s32 %v1770, %v2326
        %v2328 = vrot.slane %v1536, %v2327
        %v2329 = vsel %vm1775, %v2328, %v2324
        %vm2330 = vcmask 1041409
        %v2331 = vsel %vm2330, %v1855, %v1776
        %vm2332 = vcmask 1042434
        %v2333 = vsel %vm2332, %v1934, %v2331
        %vm2334 = vcmask 1043459
        %v2335 = vsel %vm2334, %v2013, %v2333
        %vm2336 = vcmask 1044484
        %v2337 = vsel %vm2336, %v2092, %v2335
        %vm2338 = vcmask 1045509
        %v2339 = vsel %vm2338, %v2171, %v2337
        %vm2340 = vcmask 1046534
        %v2341 = vsel %vm2340, %v2250, %v2339
        %vm2342 = vcmask 1047559
        %v2343 = vsel %vm2342, %v2329, %v2341
        %v2345 = vsel %vm1539, %v2343, -1e+30
        %2346 = vmax.xlane.f32.xlu0 %v2345
        %v2347 = vpop.xlane.xlu0 %2346
        %v2348 = vsub.f32 %v2345, %v2347
        %v2349 = vmul.f32 %v2348, 1.442695
        %v2350 = vpow.pop %v2349
        %2351 = vadd.xlane.f32.xlu0 %v2350
        %v2352 = vpop.xlane.xlu0 %2351
        %v2353 = vrcp.pop %v2352
        %v2354 = vmul.f32 %v2350, %v2353
        %2355 = vst [vmem:[%s456] sm:$0xff] %v2354
        %v2356 = vpack.c.bf16 %v2354, %v2354
        %v2357 = vld [vmem:[%s401] sm:$0xf]
        %v2358 = vld [vmem:[%s401 + $0x4] sm:$0xf]
        %v2359 = vld [vmem:[%s401 + $0x8] sm:$0xf]
        %v2360 = vld [vmem:[%s401 + $0xc] sm:$0xf]
        %v2361 = vld [vmem:[%s401 + $0x10] sm:$0xf]
        %v2362 = vld [vmem:[%s401 + $0x14] sm:$0xf]
        %v2363 = vld [vmem:[%s401 + $0x18] sm:$0xf]
        %v2364 = vld [vmem:[%s401 + $0x1c] sm:$0xf]
        %v2365 = vld [vmem:[%s401 + $0x20] sm:$0xf]
        %v2366 = vld [vmem:[%s401 + $0x24] sm:$0xf]
        %v2367 = vld [vmem:[%s401 + $0x28] sm:$0xf]
        %v2368 = vld [vmem:[%s401 + $0x2c] sm:$0xf]
        %v2369 = vld [vmem:[%s401 + $0x30] sm:$0xf]
        %v2370 = vld [vmem:[%s401 + $0x34] sm:$0xf]
        %v2371 = vld [vmem:[%s401 + $0x38] sm:$0xf]
        %v2372 = vld [vmem:[%s401 + $0x3c] sm:$0xf]
        %v2389 = vunpack.c.l.b16 %v2357
        %v2390 = vunpack.c.l.b16 %v2358
        %v2391 = vunpack.c.l.b16 %v2359
        %v2392 = vunpack.c.l.b16 %v2360
        %v2393 = vunpack.c.l.b16 %v2361
        %v2394 = vunpack.c.l.b16 %v2362
        %v2395 = vunpack.c.l.b16 %v2363
        %v2396 = vunpack.c.l.b16 %v2364
        %v2397 = vunpack.c.l.b16 %v2365
        %v2398 = vunpack.c.l.b16 %v2366
        %v2399 = vunpack.c.l.b16 %v2367
        %v2400 = vunpack.c.l.b16 %v2368
        %v2401 = vunpack.c.l.b16 %v2369
        %v2402 = vunpack.c.l.b16 %v2370
        %v2403 = vunpack.c.l.b16 %v2371
        %v2404 = vunpack.c.l.b16 %v2372
        %v2405 = vpack.c.b16 %v2390, %v2389
        %v2406 = vpack.c.b16 %v2392, %v2391
        %v2407 = vpack.c.b16 %v2394, %v2393
        %v2408 = vpack.c.b16 %v2396, %v2395
        %v2409 = vpack.c.b16 %v2398, %v2397
        %v2410 = vpack.c.b16 %v2400, %v2399
        %v2411 = vpack.c.b16 %v2402, %v2401
        %v2412 = vpack.c.b16 %v2404, %v2403
        %2421 = vmatprep.subr.bf16.mxu0 0
        %2422 = vmatpush1.bf16.msra.mxu0 %v2405
        %2423 = vmatprep.subr.bf16.mxu0 0
        %2424 = vmatpush1.bf16.msra.mxu0 %v2406
        %2425 = vmatprep.subr.bf16.mxu0 0
        %2426 = vmatpush1.bf16.msra.mxu0 %v2407
        %2427 = vmatprep.subr.bf16.mxu0 0
        %2428 = vmatpush1.bf16.msra.mxu0 %v2408
        %2429 = vmatprep.subr.bf16.mxu0 0
        %2430 = vmatpush1.bf16.msra.mxu0 %v2409
        %2431 = vmatprep.subr.bf16.mxu0 0
        %2432 = vmatpush1.bf16.msra.mxu0 %v2410
        %2433 = vmatprep.subr.bf16.mxu0 0
        %2434 = vmatpush1.bf16.msra.mxu0 %v2411
        %2435 = vmatprep.subr.bf16.mxu0 0
        %2436 = vmatpush1.bf16.msra.mxu0 %v2412
        %2437 = vmatprep.subr.bf16.mxu0 0
        %2438 = vmatpush1.bf16.msra.mxu0 0
        %2439 = vmatprep.subr.bf16.mxu0 0
        %2440 = vmatpush1.bf16.msra.mxu0 0
        %2441 = vmatprep.subr.bf16.mxu0 0
        %2442 = vmatpush1.bf16.msra.mxu0 0
        %2443 = vmatprep.subr.bf16.mxu0 0
        %2444 = vmatpush1.bf16.msra.mxu0 0
        %2445 = vmatprep.subr.bf16.mxu0 0
        %2446 = vmatpush1.bf16.msra.mxu0 0
        %2447 = vmatprep.subr.bf16.mxu0 0
        %2448 = vmatpush1.bf16.msra.mxu0 0
        %2449 = vmatprep.subr.bf16.mxu0 0
        %2450 = vmatpush1.bf16.msra.mxu0 0
        %2451 = vmatprep.subr.bf16.mxu0 0
        %2452 = vmatpush1.bf16.msra.mxu0 0
        %2453 = vmatprep.mubr.bf16.mxu0 0
        %2454 = vmatmul.mubr.bf16.gmra.mrb[0].mxu0 %v2356
        %v2455 = vpop.f32.mrb[0].mxu0
        %v2456 = vadd.f32 0.0, %v2455
        %v2457 = vpop.f32.mrb[0].mxu0
        %v2458 = vpop.f32.mrb[0].mxu0
        %v2459 = vpop.f32.mrb[0].mxu0
        %2460 = vdwg.mxu0
        %2461 = vst [vmem:[%s449] sm:$0xff] %v2456
        %s2462 = sand.u32 %s219, 1
        %s2463 = scalar_lea.sflag [#allocation5], %s2462
        %s2464 = sand.u32 %s219, 1
        %s2465 = smul.addr %s2464, 8
        %s2466 = scalar_lea.vmem [#allocation12], %s2465
        %s2467 = sand.u32 %s247, 1
        %s2468 = scalar_lea.sflag [#allocation14], %s2467
        %s2469 = sand.u32 %s247, 1
        %s2470 = smul.addr %s2469, 8
        %s2471 = scalar_lea.vmem [#allocation13], %s2470
        // Predicated region
        $region73: #{tpu_custom_call.1} parent=47 // pred_check
          %p2472 = pneg %p229
        $region74: #{tpu_custom_call.1} parent=47 // pred_check_branch
          %2474 = sbr.rel (%p2472) target = $region76
        $region75: #{tpu_custom_call.1} parent=47 // pred_region
          %s2476 = ssub.s32 128, 128
          %2477 = vsyncadd %s2463, %s2476
          %s2478 = sadd.s32 %s38, %s37
          %s2479 = smul.addr %s2478, 128
          %s2480 = scalar_lea.hbm %s7, %s2479
          %s2482 = sshll.u32 %s2466, 4
          %s2483 = int_to_ptr.vmem [resolvable:$true] %s2482
          %2485 = dma.vmem_to_hbm [thread:$0]  %s2483, 128, %s2480, %s2463
        $region76: #{tpu_custom_call.1} parent=47 // pred_fallthru
          _
        // Predicated region
        $region77: #{tpu_custom_call.1} parent=47 // pred_check
          %p2486 = pneg %p257
        $region78: #{tpu_custom_call.1} parent=47 // pred_check_branch
          %2488 = sbr.rel (%p2486) target = $region80
        $region79: #{tpu_custom_call.1} parent=47 // pred_region
          %s2490 = ssub.s32 128, 128
          %2491 = vsyncadd %s2468, %s2490
          %s2492 = sadd.s32 %s38, %s37
          %s2493 = smul.addr %s2492, 128
          %s2494 = scalar_lea.hbm %s8, %s2493
          %s2496 = sshll.u32 %s2471, 4
          %s2497 = int_to_ptr.vmem [resolvable:$true] %s2496
          %2499 = dma.vmem_to_hbm [thread:$0]  %s2497, 128, %s2494, %s2468
        $region80: #{tpu_custom_call.1} parent=47 // pred_fallthru
          _
      $region48: #{tpu_custom_call.1} parent=5 // pred_fallthru
        _
      %p2500 = scmp.le.s32.totalorder 2, %s28
      // Predicated region
      $region81: #{tpu_custom_call.1} parent=5 // pred_check
        %p2501 = pneg %p2500
      $region82: #{tpu_custom_call.1} parent=5 // pred_check_branch
        %2503 = sbr.rel (%p2501) target = $region84
      $region83: #{tpu_custom_call.1} parent=5 // pred_region
        %s2504 = ssub.s32 %s28, 2
        // Predicated region
        $region85: #{tpu_custom_call.1} parent=83 // pred_check
          %p2505 = pneg %p235
        $region86: #{tpu_custom_call.1} parent=83 // pred_check_branch
          %2507 = sbr.rel (%p2505) target = $region88
        $region87: #{tpu_custom_call.1} parent=83 // pred_region
          %s2508 = sand.u32 %s220, 1
          %s2509 = scalar_lea.sflag [#allocation5], %s2508
          %s2510 = sand.u32 %s220, 1
          %s2511 = smul.addr %s2510, 8
          %s2512 = scalar_lea.vmem [#allocation12], %s2511
          %2513 = dma.done %s2509, 128
        $region88: #{tpu_custom_call.1} parent=83 // pred_fallthru
          _
        // Predicated region
        $region89: #{tpu_custom_call.1} parent=83 // pred_check
          %p2514 = pneg %p263
        $region90: #{tpu_custom_call.1} parent=83 // pred_check_branch
          %2516 = sbr.rel (%p2514) target = $region92
        $region91: #{tpu_custom_call.1} parent=83 // pred_region
          %s2517 = sand.u32 %s248, 1
          %s2518 = scalar_lea.sflag [#allocation14], %s2517
          %s2519 = sand.u32 %s248, 1
          %s2520 = smul.addr %s2519, 8
          %s2521 = scalar_lea.vmem [#allocation13], %s2520
          %2522 = dma.done %s2518, 128
        $region92: #{tpu_custom_call.1} parent=83 // pred_fallthru
          _
      $region84: #{tpu_custom_call.1} parent=5 // pred_fallthru
        _
    $region6: #{tpu_custom_call.1} parent=1 // loop_footer
      %s32 = sadd.s32 1, %s28
    $region7: #{tpu_custom_call.1} parent=1 // loop_footer_branch
      %27 = sbr.rel target = $region3
    $region8: #{tpu_custom_call.1} parent=1 // loop_exit
      _
    %2523 = vsyncpa [#allocation4], 1
    %s2524 = scalar_lea.sflag [#allocation4], 1
    %2525 = vsyncpa %s2524, 1
    %2526 = vsyncpa [#allocation7], 1
    %s2527 = scalar_lea.sflag [#allocation7], 1
    %2528 = vsyncpa %s2527, 1
    %2529 = vsyncpa [#allocation10], 1
    %2530 = vsyncpa [#allocation5], 1
    %s2531 = scalar_lea.sflag [#allocation5], 1
    %2532 = vsyncpa %s2531, 1
    %2533 = vsyncpa [#allocation14], 1
    %s2534 = scalar_lea.sflag [#allocation14], 1
    %2535 = vsyncpa %s2534, 1

</llo_original>
